<compile_context>
chip_gen: v5e
topology: v5e:2x2
jax: 0.10.0
libtpu: 0.0.40
codegen_flags: <defaults>
</compile_context>

<pallas_src>
import functools

import jax
import jax.numpy as jnp
import numpy as np
from jax.experimental import pallas as pl
from jax.experimental.pallas import tpu as pltpu

C = 768          # model width (hard-wired by nn.Linear(64, 768))
C_CUR = 64       # cell channel count
STEPS = 3
MULTIPLIER = 3
NUM_OPS = 4      # zero, skip, linear, relu_linear
NUM_EDGES = sum(2 + i for i in range(STEPS))   # 9
HCAT_LANES = 4 * 128                           # 512: [s0|s1|r(s0)|r(s1)|h2|r(h2)|h3|r(h3)]


def _round_up(n, m):
    return ((n + m - 1) // m) * m


def _round_down(n, m):
    return (n // m) * m


# --------------------------------------------------------------------------- #
# Kernel
# --------------------------------------------------------------------------- #
def adapter_kernel(x_ref,                            # [TILE, C]   f32
                   wp01_ref, bp01_ref,               # [C, 128]  cdt, [1, 128] f32
                   w0_ref, b0_ref,                   # [256, 128] cdt, [1, 128] f32
                   w1_ref, b1_ref,                   # [384, 128] cdt, [1, 128] f32
                   w2_ref, b2_ref,                   # [512, 128] cdt, [1, 128] f32
                   wfin_ref, bfin_ref,               # [128, C]  cdt, [1, C]   f32
                   out_ref,                          # [TILE, C]   f32
                   hcat_ref):                        # scratch [TILE, 512] cdt
    cdt = wp01_ref.dtype                             # MXU input dtype (bf16 default)
    tile = x_ref.shape[0]

    x = x_ref[...]                                   # stem = Identity (f32)

    # --- preprocess0 | preprocess1 (fused): ReLU -> one [768,128] matmul ------
    xr = jnp.maximum(x, 0.0).astype(cdt)
    y01 = jnp.dot(xr, wp01_ref[...],
                  preferred_element_type=jnp.float32) + bp01_ref[...]   # [s0 | s1]

    # hcat scratch layout (every chunk is a full, 128-lane-aligned write):
    #   lanes   0:128  = [ s0 | s1 ]
    #   lanes 128:256  = [ relu(s0) | relu(s1) ]
    #   lanes 256:384  = [ h2 | relu(h2) ]      (written after step 0)
    #   lanes 384:512  = [ h3 | relu(h3) ]      (written after step 1)
    hcat_ref[:, 0:128] = y01.astype(cdt)
    hcat_ref[:, 128:256] = jnp.maximum(y01, 0.0).astype(cdt)

    # Hoisted lane mask: relu only the duplicated (upper-64-lane) half.
    lane = jax.lax.broadcasted_iota(jnp.int32, (tile, 2 * C_CUR), 1)
    relu_lanes = lane >= C_CUR

    # --- 3 cell steps: one lane-dense batched matmul per step -----------------
    # Step weight columns are duplicated in the wrapper, so y = [acc_s | acc_s].
    step_cfg = ((w0_ref, b0_ref, 256), (w1_ref, b1_ref, 384), (w2_ref, b2_ref, 512))
    acc_sum = None
    for s, (w_ref, b_ref, k) in enumerate(step_cfg):
        y = jnp.dot(hcat_ref[:, :k], w_ref[...],
                    preferred_element_type=jnp.float32) + b_ref[...]    # f32
        acc_sum = y if acc_sum is None else acc_sum + y                 # f32 VPU add
        if s + 1 < STEPS:
            chunk = jnp.where(relu_lanes, jnp.maximum(y, 0.0), y)       # [h | relu(h)]
            hcat_ref[:, 256 + 128 * s: 256 + 128 * (s + 1)] = chunk.astype(cdt)

    # --- final Linear(64 -> 768) + residual ------------------------------------
    # cell_out = acc0 + acc1 + acc2 (both 64-lane halves of acc_sum are equal);
    # wfin_ref rows 64:128 are zero so only the "plain" half contributes.
    out = jnp.dot(acc_sum.astype(cdt), wfin_ref[...],
                  preferred_element_type=jnp.float32) + bfin_ref[...]
    out_ref[...] = out + x                                              # residual in f32


# --------------------------------------------------------------------------- #
# Wrapper: fold alphas into pre-stacked weights, set up grid/BlockSpecs
# --------------------------------------------------------------------------- #
def _build_kernel_weights(alphas, params, compute_dtype):
    """Fold softmax(alphas) into lane-dense stacked weights (done once, in XLA)."""
    a = jax.nn.softmax(alphas.astype(jnp.float32), axis=-1)    # [9, 4]
    f32 = jnp.float32

    wp01 = jnp.concatenate([params["wp0"], params["wp1"]], axis=1)   # [768, 128]
    bp01 = jnp.concatenate([params["bp0"], params["bp1"]], axis=1)   # [1, 128]

    eye = jnp.eye(C_CUR, dtype=f32)
    w_steps, b_steps = [], []
    offset = 0
    for s in range(STEPS):
        m = 2 + s
        wl, wr = [], []
        bias = jnp.zeros((1, C_CUR), f32)
        for j in range(m):
            e = offset + j
            # zero op contributes nothing; skip = h @ (a_skip * I)
            wl.append(a[e, 2] * params["wop"][e, 0] + a[e, 1] * eye)   # plain half
            wr.append(a[e, 3] * params["wop"][e, 1])                   # relu half
            bias = bias + a[e, 2] * params["bop"][e, 0] + a[e, 3] * params["bop"][e, 1]
        # Row order must match the hcat scratch layout in the kernel:
        #   [s0, s1, relu(s0), relu(s1), h2, relu(h2), h3, relu(h3)]
        blocks = [wl[0], wl[1], wr[0], wr[1]]
        for j in range(2, m):
            blocks.extend([wl[j], wr[j]])
        w = jnp.concatenate(blocks, axis=0)                            # [128*m, 64]
        w = jnp.concatenate([w, w], axis=1)                            # [128*m, 128]
        w_steps.append(w)
        b_steps.append(jnp.concatenate([bias, bias], axis=1))          # [1, 128]
        offset += m

    # Final weight extended to K=128 (lower half zero) so the summed 128-wide
    # acc feeds it lane-dense with no sub-vreg slicing.
    wfin_ext = jnp.concatenate(
        [params["wfin"], jnp.zeros((C_CUR, C), f32)], axis=0)          # [128, 768]

    cd = compute_dtype
    return {
        "wp01": wp01.astype(cd), "bp01": bp01,
        "w0": w_steps[0].astype(cd), "b0": b_steps[0],
        "w1": w_steps[1].astype(cd), "b1": b_steps[1],
        "w2": w_steps[2].astype(cd), "b2": b_steps[2],
        "wfin": wfin_ext.astype(cd), "bfin": params["bfin"],
    }


def _device_vmem_budget():
    """v7x has 64 MiB VMEM per TensorCore; v5e/v6e have 128 MiB."""
    try:
        kind = jax.devices()[0].device_kind.lower()
    except Exception:
        kind = ""
    if "v7" in kind:
        return 48 * 1024 * 1024
    return 80 * 1024 * 1024


@functools.partial(jax.jit, static_argnames=("compute_dtype", "tile_n"))
def adapter_forward(x, alphas, params, *, compute_dtype=jnp.bfloat16, tile_n=2048):
    """x: [B, T, C] f32, alphas: [NUM_EDGES, NUM_OPS] f32."""
    B, T, _ = x.shape
    N = B * T
    x2d = x.reshape(N, C).astype(jnp.float32)

    kp = _build_kernel_weights(alphas, params, compute_dtype)
    weights = (kp["wp01"], kp["bp01"],
               kp["w0"], kp["b0"], kp["w1"], kp["b1"], kp["w2"], kp["b2"],
               kp["wfin"], kp["bfin"])

    # Row tiling:
    #  * tile is a multiple of 8 (otherwise the (8,128) BlockSpec rule fails),
    #  * at least 2 grid steps whenever N allows it so the "parallel" axis can
    #    be sharded across v7x's 2 TensorCores,
    #  * rows padded only up to the chosen tile (padded rows are zeros and are
    #    sliced off after the call).
    n8 = _round_up(N, 8)
    tile_req = max(8, _round_down(int(tile_n), 8))
    if n8 >= 16:
        tile = min(tile_req, max(8, _round_down(n8 // 2, 8)))
    else:
        tile = n8
    n_pad = _round_up(n8, tile)
    if n_pad != N:
        x2d = jnp.pad(x2d, ((0, n_pad - N), (0, 0)))
    grid = (n_pad // tile,)

    row_spec = pl.BlockSpec((tile, C), lambda i: (i, 0))

    def const_spec(arr):                       # whole weight resident in VMEM
        # Weights are tiny (<1 MiB total) so the default double-buffering cost
        # is negligible; no need for single-buffered pipeline_mode.
        return pl.BlockSpec(arr.shape, lambda i: (0,) * arr.ndim)

    flops = 2 * n_pad * (C * 2 * C_CUR
                         + (256 + 384 + 512) * 2 * C_CUR
                         + 2 * C_CUR * C)
    bytes_accessed = (2 * n_pad * C * 4
                      + sum(int(np.prod(w.shape)) * w.dtype.itemsize for w in weights))

    out2d = pl.pallas_call(
        adapter_kernel,
        out_shape=jax.ShapeDtypeStruct((n_pad, C), jnp.float32),
        grid=grid,
        in_specs=[row_spec] + [const_spec(w) for w in weights],
        out_specs=row_spec,
        scratch_shapes=[pltpu.VMEM((tile, HCAT_LANES), compute_dtype)],
        compiler_params=pltpu.CompilerParams(
            dimension_semantics=("parallel",),
            vmem_limit_bytes=_device_vmem_budget()),
        cost_estimate=pl.CostEstimate(flops=int(flops), transcendentals=0,
                                      bytes_accessed=int(bytes_accessed)),
    )(x2d, *weights)

    return out2d[:N].reshape(B, T, C)


# --------------------------------------------------------------------------- #
# Pure-JAX reference (original, un-folded semantics) and params
# --------------------------------------------------------------------------- #
def adapter_reference(x, alphas, params):
    B, T, _ = x.shape
    x2d = x.reshape(B * T, C)
    a = jax.nn.softmax(alphas, axis=-1)
    xr = jnp.maximum(x2d, 0.0)
    s0 = xr @ params["wp0"] + params["bp0"]
    s1 = xr @ params["wp1"] + params["bp1"]
    states = [s0, s1]
    offset = 0
    for _ in range(STEPS):
        acc = jnp.zeros_like(s0)
        for j, h in enumerate(states):
            e = offset + j
            lin = h @ params["wop"][e, 0] + params["bop"][e, 0]
            rlin = jnp.maximum(h, 0.0) @ params["wop"][e, 1] + params["bop"][e, 1]
            acc = acc + a[e, 1] * h + a[e, 2] * lin + a[e, 3] * rlin
        offset += len(states)
        states.append(acc)
    cell_out = states[-1] + states[-2] + states[-3]
    out = cell_out @ params["wfin"] + params["bfin"]
    return (out + x2d).reshape(B, T, C)


def init_params(key):
    ks = jax.random.split(key, 8)
    std = 0.02
    return {
        "wp0": std * jax.random.normal(ks[0], (C, C_CUR), jnp.float32),
        "bp0": jnp.zeros((1, C_CUR), jnp.float32),
        "wp1": std * jax.random.normal(ks[1], (C, C_CUR), jnp.float32),
        "bp1": jnp.zeros((1, C_CUR), jnp.float32),
        "wop": std * jax.random.normal(ks[2], (NUM_EDGES, 2, C_CUR, C_CUR), jnp.float32),
        "bop": std * jax.random.normal(ks[3], (NUM_EDGES, 2, 1, C_CUR), jnp.float32),
        "wfin": std * jax.random.normal(ks[4], (C_CUR, C), jnp.float32),
        "bfin": std * jax.random.normal(ks[5], (1, C), jnp.float32),
    }


if __name__ == "__main__":
    key = jax.random.PRNGKey(0)
    kx, ka, kp = jax.random.split(key, 3)

    B, T = 2, 8
    x = jax.random.normal(kx, (B, T, C), jnp.float32)
    alphas = jax.random.normal(ka, (NUM_EDGES, NUM_OPS), jnp.float32)
    params = init_params(kp)

    ref = adapter_reference(x, alphas, params)

    # Default fast path: bf16 MXU inputs, f32 accumulation / residual / store.
    out_bf16 = jax.block_until_ready(adapter_forward(x, alphas, params))
    np.testing.assert_allclose(np.asarray(out_bf16), np.asarray(ref),
                               rtol=5e-2, atol=5e-2)

    # Tight-accuracy fallback: f32 MXU inputs (multi-pass matmul lowering).
    out_f32 = jax.block_until_ready(
        adapter_forward(x, alphas, params, compute_dtype=jnp.float32))
    np.testing.assert_allclose(np.asarray(out_f32), np.asarray(ref),
                               rtol=1e-2, atol=1e-2)

    print("KERNEL_OK")
</pallas_src>

<mosaic_0001>
module attributes {stable_mosaic.version = 11 : i64} {
  func.func @adapter_kernel(%arg0: i32, %arg1: memref<8x768xf32, #tpu.memory_space<vmem>>, %arg2: memref<768x128xbf16, #tpu.memory_space<vmem>>, %arg3: memref<1x128xf32, #tpu.memory_space<vmem>>, %arg4: memref<256x128xbf16, #tpu.memory_space<vmem>>, %arg5: memref<1x128xf32, #tpu.memory_space<vmem>>, %arg6: memref<384x128xbf16, #tpu.memory_space<vmem>>, %arg7: memref<1x128xf32, #tpu.memory_space<vmem>>, %arg8: memref<512x128xbf16, #tpu.memory_space<vmem>>, %arg9: memref<1x128xf32, #tpu.memory_space<vmem>>, %arg10: memref<128x768xbf16, #tpu.memory_space<vmem>>, %arg11: memref<1x768xf32, #tpu.memory_space<vmem>>, %arg12: memref<8x768xf32, #tpu.memory_space<vmem>>, %arg13: memref<8x512xbf16, #tpu.memory_space<vmem>>) attributes {dimension_semantics = [#tpu.dimension_semantics<parallel>], iteration_bounds = array<i64: 2>, scalar_prefetch = 0 : i64, scratch_operands = 1 : i64, tpu.core_type = #tpu.core_type<tc>, window_params = [{transform_indices = @transform_0, window_bounds = array<i64: 8, 768>}, {pipeline_mode = #tpu.pipeline_mode<synchronous>, transform_indices = @transform_1, window_bounds = array<i64: 768, 128>}, {pipeline_mode = #tpu.pipeline_mode<synchronous>, transform_indices = @transform_2, window_bounds = array<i64: 1, 128>}, {pipeline_mode = #tpu.pipeline_mode<synchronous>, transform_indices = @transform_3, window_bounds = array<i64: 256, 128>}, {pipeline_mode = #tpu.pipeline_mode<synchronous>, transform_indices = @transform_4, window_bounds = array<i64: 1, 128>}, {pipeline_mode = #tpu.pipeline_mode<synchronous>, transform_indices = @transform_5, window_bounds = array<i64: 384, 128>}, {pipeline_mode = #tpu.pipeline_mode<synchronous>, transform_indices = @transform_6, window_bounds = array<i64: 1, 128>}, {pipeline_mode = #tpu.pipeline_mode<synchronous>, transform_indices = @transform_7, window_bounds = array<i64: 512, 128>}, {pipeline_mode = #tpu.pipeline_mode<synchronous>, transform_indices = @transform_8, window_bounds = array<i64: 1, 128>}, {pipeline_mode = #tpu.pipeline_mode<synchronous>, transform_indices = @transform_9, window_bounds = array<i64: 128, 768>}, {pipeline_mode = #tpu.pipeline_mode<synchronous>, transform_indices = @transform_10, window_bounds = array<i64: 1, 768>}, {transform_indices = @transform_11, window_bounds = array<i64: 8, 768>}]} {
    %c0 = arith.constant 0 : index
    %c0_0 = arith.constant 0 : index
    %0 = vector.load %arg1[%c0, %c0_0] : memref<8x768xf32, #tpu.memory_space<vmem>>, vector<8x768xf32>
    %cst = arith.constant 0.000000e+00 : f32
    %1 = vector.broadcast %cst : f32 to vector<8x768xf32>
    %2 = arith.maximumf %0, %1 : vector<8x768xf32>
    %3 = arith.truncf %2 : vector<8x768xf32> to vector<8x768xbf16>
    %c0_1 = arith.constant 0 : index
    %c0_2 = arith.constant 0 : index
    %4 = vector.load %arg2[%c0_1, %c0_2] : memref<768x128xbf16, #tpu.memory_space<vmem>>, vector<768x128xbf16>
    %cst_3 = arith.constant dense<0.000000e+00> : vector<8x128xf32>
    %5 = tpu.matmul %3, %4, %cst_3 {dimension_numbers = #tpu.dot_dimension_numbers<[1], [0], [0], [1], [0, 0, 1, 1], [], []>} : vector<8x768xbf16>, vector<768x128xbf16>, vector<8x128xf32> -> vector<8x128xf32>
    %c0_4 = arith.constant 0 : index
    %c0_5 = arith.constant 0 : index
    %6 = vector.load %arg3[%c0_4, %c0_5] : memref<1x128xf32, #tpu.memory_space<vmem>>, vector<1x128xf32>
    %7 = vector.broadcast %6 : vector<1x128xf32> to vector<8x128xf32>
    %8 = arith.addf %5, %7 : vector<8x128xf32>
    %9 = arith.truncf %8 : vector<8x128xf32> to vector<8x128xbf16>
    %c0_6 = arith.constant 0 : index
    %c0_7 = arith.constant 0 : index
    %10 = vector.load %arg13[%c0_6, %c0_7] : memref<8x512xbf16, #tpu.memory_space<vmem>>, vector<8x128xbf16>
    tpu.vector_store %arg13[%c0_6, %c0_7], %9 {strides = array<i32>} : memref<8x512xbf16, #tpu.memory_space<vmem>>, vector<8x128xbf16>,
    %cst_8 = arith.constant 0.000000e+00 : f32
    %11 = vector.broadcast %cst_8 : f32 to vector<8x128xf32>
    %12 = arith.maximumf %8, %11 : vector<8x128xf32>
    %13 = arith.truncf %12 : vector<8x128xf32> to vector<8x128xbf16>
    %c0_9 = arith.constant 0 : index
    %c128 = arith.constant 128 : index
    %14 = vector.load %arg13[%c0_9, %c128] : memref<8x512xbf16, #tpu.memory_space<vmem>>, vector<8x128xbf16>
    tpu.vector_store %arg13[%c0_9, %c128], %13 {strides = array<i32>} : memref<8x512xbf16, #tpu.memory_space<vmem>>, vector<8x128xbf16>,
    %15 = tpu.iota {dimensions = array<i32: 1>} : vector<8x128xi32>
    %c64_i32 = arith.constant 64 : i32
    %16 = vector.broadcast %c64_i32 : i32 to vector<8x128xi32>
    %17 = arith.cmpi sge, %15, %16 : vector<8x128xi32>
    %c0_10 = arith.constant 0 : index
    %c0_11 = arith.constant 0 : index
    %18 = vector.load %arg13[%c0_10, %c0_11] : memref<8x512xbf16, #tpu.memory_space<vmem>>, vector<8x256xbf16>
    %c0_12 = arith.constant 0 : index
    %c0_13 = arith.constant 0 : index
    %19 = vector.load %arg4[%c0_12, %c0_13] : memref<256x128xbf16, #tpu.memory_space<vmem>>, vector<256x128xbf16>
    %cst_14 = arith.constant dense<0.000000e+00> : vector<8x128xf32>
    %20 = tpu.matmul %18, %19, %cst_14 {dimension_numbers = #tpu.dot_dimension_numbers<[1], [0], [0], [1], [0, 0, 1, 1], [], []>} : vector<8x256xbf16>, vector<256x128xbf16>, vector<8x128xf32> -> vector<8x128xf32>
    %c0_15 = arith.constant 0 : index
    %c0_16 = arith.constant 0 : index
    %21 = vector.load %arg5[%c0_15, %c0_16] : memref<1x128xf32, #tpu.memory_space<vmem>>, vector<1x128xf32>
    %22 = vector.broadcast %21 : vector<1x128xf32> to vector<8x128xf32>
    %23 = arith.addf %20, %22 : vector<8x128xf32>
    %cst_17 = arith.constant 0.000000e+00 : f32
    %24 = vector.broadcast %cst_17 : f32 to vector<8x128xf32>
    %25 = arith.maximumf %23, %24 : vector<8x128xf32>
    %26 = arith.select %17, %25, %23 : vector<8x128xi1>, vector<8x128xf32>
    %27 = arith.truncf %26 : vector<8x128xf32> to vector<8x128xbf16>
    %c0_18 = arith.constant 0 : index
    %c256 = arith.constant 256 : index
    %28 = vector.load %arg13[%c0_18, %c256] : memref<8x512xbf16, #tpu.memory_space<vmem>>, vector<8x128xbf16>
    tpu.vector_store %arg13[%c0_18, %c256], %27 {strides = array<i32>} : memref<8x512xbf16, #tpu.memory_space<vmem>>, vector<8x128xbf16>,
    %c0_19 = arith.constant 0 : index
    %c0_20 = arith.constant 0 : index
    %29 = vector.load %arg13[%c0_19, %c0_20] : memref<8x512xbf16, #tpu.memory_space<vmem>>, vector<8x384xbf16>
    %c0_21 = arith.constant 0 : index
    %c0_22 = arith.constant 0 : index
    %30 = vector.load %arg6[%c0_21, %c0_22] : memref<384x128xbf16, #tpu.memory_space<vmem>>, vector<384x128xbf16>
    %cst_23 = arith.constant dense<0.000000e+00> : vector<8x128xf32>
    %31 = tpu.matmul %29, %30, %cst_23 {dimension_numbers = #tpu.dot_dimension_numbers<[1], [0], [0], [1], [0, 0, 1, 1], [], []>} : vector<8x384xbf16>, vector<384x128xbf16>, vector<8x128xf32> -> vector<8x128xf32>
    %c0_24 = arith.constant 0 : index
    %c0_25 = arith.constant 0 : index
    %32 = vector.load %arg7[%c0_24, %c0_25] : memref<1x128xf32, #tpu.memory_space<vmem>>, vector<1x128xf32>
    %33 = vector.broadcast %32 : vector<1x128xf32> to vector<8x128xf32>
    %34 = arith.addf %31, %33 : vector<8x128xf32>
    %35 = arith.addf %23, %34 : vector<8x128xf32>
    %cst_26 = arith.constant 0.000000e+00 : f32
    %36 = vector.broadcast %cst_26 : f32 to vector<8x128xf32>
    %37 = arith.maximumf %34, %36 : vector<8x128xf32>
    %38 = arith.select %17, %37, %34 : vector<8x128xi1>, vector<8x128xf32>
    %39 = arith.truncf %38 : vector<8x128xf32> to vector<8x128xbf16>
    %c0_27 = arith.constant 0 : index
    %c384 = arith.constant 384 : index
    %40 = vector.load %arg13[%c0_27, %c384] : memref<8x512xbf16, #tpu.memory_space<vmem>>, vector<8x128xbf16>
    tpu.vector_store %arg13[%c0_27, %c384], %39 {strides = array<i32>} : memref<8x512xbf16, #tpu.memory_space<vmem>>, vector<8x128xbf16>,
    %c0_28 = arith.constant 0 : index
    %c0_29 = arith.constant 0 : index
    %41 = vector.load %arg13[%c0_28, %c0_29] : memref<8x512xbf16, #tpu.memory_space<vmem>>, vector<8x512xbf16>
    %c0_30 = arith.constant 0 : index
    %c0_31 = arith.constant 0 : index
    %42 = vector.load %arg8[%c0_30, %c0_31] : memref<512x128xbf16, #tpu.memory_space<vmem>>, vector<512x128xbf16>
    %cst_32 = arith.constant dense<0.000000e+00> : vector<8x128xf32>
    %43 = tpu.matmul %41, %42, %cst_32 {dimension_numbers = #tpu.dot_dimension_numbers<[1], [0], [0], [1], [0, 0, 1, 1], [], []>} : vector<8x512xbf16>, vector<512x128xbf16>, vector<8x128xf32> -> vector<8x128xf32>
    %c0_33 = arith.constant 0 : index
    %c0_34 = arith.constant 0 : index
    %44 = vector.load %arg9[%c0_33, %c0_34] : memref<1x128xf32, #tpu.memory_space<vmem>>, vector<1x128xf32>
    %45 = vector.broadcast %44 : vector<1x128xf32> to vector<8x128xf32>
    %46 = arith.addf %43, %45 : vector<8x128xf32>
    %47 = arith.addf %35, %46 : vector<8x128xf32>
    %48 = arith.truncf %47 : vector<8x128xf32> to vector<8x128xbf16>
    %c0_35 = arith.constant 0 : index
    %c0_36 = arith.constant 0 : index
    %49 = vector.load %arg10[%c0_35, %c0_36] : memref<128x768xbf16, #tpu.memory_space<vmem>>, vector<128x768xbf16>
    %cst_37 = arith.constant dense<0.000000e+00> : vector<8x768xf32>
    %50 = tpu.matmul %48, %49, %cst_37 {dimension_numbers = #tpu.dot_dimension_numbers<[1], [0], [0], [1], [0, 0, 1, 1], [], []>} : vector<8x128xbf16>, vector<128x768xbf16>, vector<8x768xf32> -> vector<8x768xf32>
    %c0_38 = arith.constant 0 : index
    %c0_39 = arith.constant 0 : index
    %51 = vector.load %arg11[%c0_38, %c0_39] : memref<1x768xf32, #tpu.memory_space<vmem>>, vector<1x768xf32>
    %52 = vector.broadcast %51 : vector<1x768xf32> to vector<8x768xf32>
    %53 = arith.addf %50, %52 : vector<8x768xf32>
    %54 = arith.addf %53, %0 : vector<8x768xf32>
    %c0_40 = arith.constant 0 : index
    %c0_41 = arith.constant 0 : index
    %55 = vector.load %arg12[%c0_40, %c0_41] : memref<8x768xf32, #tpu.memory_space<vmem>>, vector<8x768xf32>
    tpu.vector_store %arg12[%c0_40, %c0_41], %54 {strides = array<i32>} : memref<8x768xf32, #tpu.memory_space<vmem>>, vector<8x768xf32>,
    return
  }
  func.func @transform_0(%arg0: i32) -> (i32, i32) {
    %c0_i32 = arith.constant 0 : i32
    %c0_i32_0 = arith.constant 0 : i32
    return %arg0, %c0_i32 : i32, i32
  }
  func.func @transform_1(%arg0: i32) -> (i32, i32) {
    %c0_i32 = arith.constant 0 : i32
    %c0_i32_0 = arith.constant 0 : i32
    %c0_i32_1 = arith.constant 0 : i32
    return %c0_i32, %c0_i32_0 : i32, i32
  }
  func.func @transform_2(%arg0: i32) -> (i32, i32) {
    %c0_i32 = arith.constant 0 : i32
    %c0_i32_0 = arith.constant 0 : i32
    %c0_i32_1 = arith.constant 0 : i32
    return %c0_i32, %c0_i32_0 : i32, i32
  }
  func.func @transform_3(%arg0: i32) -> (i32, i32) {
    %c0_i32 = arith.constant 0 : i32
    %c0_i32_0 = arith.constant 0 : i32
    %c0_i32_1 = arith.constant 0 : i32
    return %c0_i32, %c0_i32_0 : i32, i32
  }
  func.func @transform_4(%arg0: i32) -> (i32, i32) {
    %c0_i32 = arith.constant 0 : i32
    %c0_i32_0 = arith.constant 0 : i32
    %c0_i32_1 = arith.constant 0 : i32
    return %c0_i32, %c0_i32_0 : i32, i32
  }
  func.func @transform_5(%arg0: i32) -> (i32, i32) {
    %c0_i32 = arith.constant 0 : i32
    %c0_i32_0 = arith.constant 0 : i32
    %c0_i32_1 = arith.constant 0 : i32
    return %c0_i32, %c0_i32_0 : i32, i32
  }
  func.func @transform_6(%arg0: i32) -> (i32, i32) {
    %c0_i32 = arith.constant 0 : i32
    %c0_i32_0 = arith.constant 0 : i32
    %c0_i32_1 = arith.constant 0 : i32
    return %c0_i32, %c0_i32_0 : i32, i32
  }
  func.func @transform_7(%arg0: i32) -> (i32, i32) {
    %c0_i32 = arith.constant 0 : i32
    %c0_i32_0 = arith.constant 0 : i32
    %c0_i32_1 = arith.constant 0 : i32
    return %c0_i32, %c0_i32_0 : i32, i32
  }
  func.func @transform_8(%arg0: i32) -> (i32, i32) {
    %c0_i32 = arith.constant 0 : i32
    %c0_i32_0 = arith.constant 0 : i32
    %c0_i32_1 = arith.constant 0 : i32
    return %c0_i32, %c0_i32_0 : i32, i32
  }
  func.func @transform_9(%arg0: i32) -> (i32, i32) {
    %c0_i32 = arith.constant 0 : i32
    %c0_i32_0 = arith.constant 0 : i32
    %c0_i32_1 = arith.constant 0 : i32
    return %c0_i32, %c0_i32_0 : i32, i32
  }
  func.func @transform_10(%arg0: i32) -> (i32, i32) {
    %c0_i32 = arith.constant 0 : i32
    %c0_i32_0 = arith.constant 0 : i32
    %c0_i32_1 = arith.constant 0 : i32
    return %c0_i32, %c0_i32_0 : i32, i32
  }
  func.func @transform_11(%arg0: i32) -> (i32, i32) {
    %c0_i32 = arith.constant 0 : i32
    %c0_i32_0 = arith.constant 0 : i32
    return %arg0, %c0_i32 : i32, i32
  }
}

</mosaic_0001>

<llo_original>
// kernel: adapter_forward.1
$region0: #{adapter_forward.1}
  #allocation0 [shape = 'u32[]', space=smem, size = 0x4, offset = 0x4, fixed_abs, tag = 'smem constant byte address 0x4 - core index']
  #allocation1 [shape = 'u32[72,128]{1,0:T(1,128)}', space=vmem, size = 0x9000, scoped, tag = 'internal scratch']
  #allocation2 [shape = 'bf16[8,512]{1,0:T(8,128)(2,1)}', space=vmem, size = 0x2000, scoped, tag = 'scratch operand']
  %s0 = inlined_call_operand.vmem [shape: f32[16,768], index: 0, kind: input, shape index: {}]
  %s1 = inlined_call_operand.vmem [shape: bf16[768,128], index: 1, kind: input, shape index: {}]
  %s2 = inlined_call_operand.vmem [shape: f32[1,128], index: 2, kind: input, shape index: {}]
  %s3 = inlined_call_operand.vmem [shape: bf16[256,128], index: 3, kind: input, shape index: {}]
  %s4 = inlined_call_operand.vmem [shape: f32[1,128], index: 4, kind: input, shape index: {}]
  %s5 = inlined_call_operand.vmem [shape: bf16[384,128], index: 5, kind: input, shape index: {}]
  %s6 = inlined_call_operand.vmem [shape: f32[1,128], index: 6, kind: input, shape index: {}]
  %s7 = inlined_call_operand.vmem [shape: bf16[512,128], index: 7, kind: input, shape index: {}]
  %s8 = inlined_call_operand.vmem [shape: f32[1,128], index: 8, kind: input, shape index: {}]
  %s9 = inlined_call_operand.vmem [shape: bf16[128,768], index: 9, kind: input, shape index: {}]
  %s10 = inlined_call_operand.vmem [shape: f32[1,768], index: 10, kind: input, shape index: {}]
  %s11 = inlined_call_operand.hbm [shape: f32[16,768], index: 11, kind: output, shape index: {}]
  %s12 = sld [smem:[#allocation0]]
  $region77: #{adapter_forward.1} parent=0
    _
  %s14 = ssub.s32 1, %s12
  %s15 = scalar_select 0, %s14, %s12
  $region1: #{adapter_forward.1} parent=0
    #allocation3 [shape = 'u8[49152]{0}', space=vmem, size = 0xc000, scoped, tag = 'output window, operand 0']
    #allocation4 [shape = 's32[2]{0}', space=sflag, size = 0x8, scoped, tag = 'scoped memory for adapter_forward.1']
    %16 = vsyncpa [#allocation4], 0
    %s17 = scalar_lea.sflag [#allocation4], 1
    %18 = vsyncpa %s17, 0
    loop: start=0, step=1, limit=4
    $region2: #{adapter_forward.1} parent=1 // loop_pre_header
      _
    $region3: #{adapter_forward.1} parent=1 // loop_header
      %s20 = sphi 0, %s24
      %p21 = scmp.ge.s32.totalorder %s20, 4
      %s30 = sphi 0, %s32
      %s33 = sphi 0, %s30
      %s34 = sphi 0, %s33
      %s50 = sphi 0, %s34
      %s54 = sphi 0, %s54
      %s56 = sphi 0, %s54
      %s57 = sphi 0, %s56
      %s71 = sphi 0, %s57
      %s75 = sphi 0, %s75
      %s77 = sphi 0, %s75
      %s78 = sphi 0, %s77
      %s92 = sphi 0, %s78
      %s96 = sphi 0, %s96
      %s98 = sphi 0, %s96
      %s99 = sphi 0, %s98
      %s113 = sphi 0, %s99
      %s117 = sphi 0, %s117
      %s119 = sphi 0, %s117
      %s120 = sphi 0, %s119
      %s134 = sphi 0, %s120
      %s138 = sphi 0, %s138
      %s140 = sphi 0, %s138
      %s141 = sphi 0, %s140
      %s155 = sphi 0, %s141
      %s159 = sphi 0, %s159
      %s161 = sphi 0, %s159
      %s162 = sphi 0, %s161
      %s176 = sphi 0, %s162
      %s180 = sphi 0, %s180
      %s182 = sphi 0, %s180
      %s183 = sphi 0, %s182
      %s197 = sphi 0, %s183
      %s201 = sphi 0, %s201
      %s203 = sphi 0, %s201
      %s204 = sphi 0, %s203
      %s218 = sphi 0, %s204
      %s222 = sphi 0, %s222
      %s224 = sphi 0, %s222
      %s225 = sphi 0, %s224
      %s239 = sphi 0, %s225
      %s243 = sphi 0, %s243
      %s245 = sphi 0, %s243
      %s246 = sphi 0, %s245
      %s260 = sphi 0, %s246
      %s266 = sphi 0, %s268
      %s269 = sphi 0, %s266
      %s270 = sphi 0, %s269
      %s286 = sphi 0, %s270
    $region4: #{adapter_forward.1} parent=1 // loop_header_branch
      %23 = sbr.rel (%p21) target = $region8
    $region5: #{adapter_forward.1} parent=1 // loop_body
      %s25 = ssub.s32 %s20, 1
      %s26 = ssub.s32 %s20, 2
      %s27 = sadd.s32 %s20, 1
      %s28 = ssub.s32 %s20, %s27
      %p29 = scmp.eq.s32.totalorder %s28, 0
      %s31 = sadd.s32 %s30, 1
      %s32 = scalar_select %p29, %s30, %s31
      %p35 = pneg %p29
      %p36 = scmp.eq.s32.totalorder %s20, 1
      %p37 = por %p35, %p36
      %p38 = scmp.ne.s32.totalorder %s30, %s33
      %p39 = scmp.eq.s32.totalorder %s20, 0
      %p40 = por %p38, %p39
      %p41 = scmp.ne.s32.totalorder %s30, %s33
      %p42 = scmp.eq.s32.totalorder %s25, 1
      %p43 = por %p41, %p42
      %p44 = scmp.ne.s32.totalorder %s33, %s34
      %p45 = scmp.eq.s32.totalorder %s25, 0
      %p46 = por %p44, %p45
      %p47 = scmp.ne.s32.totalorder %s33, %s34
      %p48 = scmp.eq.s32.totalorder %s26, 1
      %p49 = por %p47, %p48
      %p51 = scmp.ne.s32.totalorder %s34, %s50
      %p52 = scmp.eq.s32.totalorder %s26, 0
      %p53 = por %p51, %p52
      %s55 = sadd.s32 %s54, 1
      %p58 = scmp.eq.s32.totalorder %s20, 1
      %p59 = scmp.ne.s32.totalorder %s54, %s56
      %p60 = scmp.eq.s32.totalorder %s20, 0
      %p61 = por %p59, %p60
      %p62 = scmp.ne.s32.totalorder %s54, %s56
      %p63 = scmp.eq.s32.totalorder %s25, 1
      %p64 = por %p62, %p63
      %p65 = scmp.ne.s32.totalorder %s56, %s57
      %p66 = scmp.eq.s32.totalorder %s25, 0
      %p67 = por %p65, %p66
      %p68 = scmp.ne.s32.totalorder %s56, %s57
      %p69 = scmp.eq.s32.totalorder %s26, 1
      %p70 = por %p68, %p69
      %p72 = scmp.ne.s32.totalorder %s57, %s71
      %p73 = scmp.eq.s32.totalorder %s26, 0
      %p74 = por %p72, %p73
      %s76 = sadd.s32 %s75, 1
      %p79 = scmp.eq.s32.totalorder %s20, 1
      %p80 = scmp.ne.s32.totalorder %s75, %s77
      %p81 = scmp.eq.s32.totalorder %s20, 0
      %p82 = por %p80, %p81
      %p83 = scmp.ne.s32.totalorder %s75, %s77
      %p84 = scmp.eq.s32.totalorder %s25, 1
      %p85 = por %p83, %p84
      %p86 = scmp.ne.s32.totalorder %s77, %s78
      %p87 = scmp.eq.s32.totalorder %s25, 0
      %p88 = por %p86, %p87
      %p89 = scmp.ne.s32.totalorder %s77, %s78
      %p90 = scmp.eq.s32.totalorder %s26, 1
      %p91 = por %p89, %p90
      %p93 = scmp.ne.s32.totalorder %s78, %s92
      %p94 = scmp.eq.s32.totalorder %s26, 0
      %p95 = por %p93, %p94
      %s97 = sadd.s32 %s96, 1
      %p100 = scmp.eq.s32.totalorder %s20, 1
      %p101 = scmp.ne.s32.totalorder %s96, %s98
      %p102 = scmp.eq.s32.totalorder %s20, 0
      %p103 = por %p101, %p102
      %p104 = scmp.ne.s32.totalorder %s96, %s98
      %p105 = scmp.eq.s32.totalorder %s25, 1
      %p106 = por %p104, %p105
      %p107 = scmp.ne.s32.totalorder %s98, %s99
      %p108 = scmp.eq.s32.totalorder %s25, 0
      %p109 = por %p107, %p108
      %p110 = scmp.ne.s32.totalorder %s98, %s99
      %p111 = scmp.eq.s32.totalorder %s26, 1
      %p112 = por %p110, %p111
      %p114 = scmp.ne.s32.totalorder %s99, %s113
      %p115 = scmp.eq.s32.totalorder %s26, 0
      %p116 = por %p114, %p115
      %s118 = sadd.s32 %s117, 1
      %p121 = scmp.eq.s32.totalorder %s20, 1
      %p122 = scmp.ne.s32.totalorder %s117, %s119
      %p123 = scmp.eq.s32.totalorder %s20, 0
      %p124 = por %p122, %p123
      %p125 = scmp.ne.s32.totalorder %s117, %s119
      %p126 = scmp.eq.s32.totalorder %s25, 1
      %p127 = por %p125, %p126
      %p128 = scmp.ne.s32.totalorder %s119, %s120
      %p129 = scmp.eq.s32.totalorder %s25, 0
      %p130 = por %p128, %p129
      %p131 = scmp.ne.s32.totalorder %s119, %s120
      %p132 = scmp.eq.s32.totalorder %s26, 1
      %p133 = por %p131, %p132
      %p135 = scmp.ne.s32.totalorder %s120, %s134
      %p136 = scmp.eq.s32.totalorder %s26, 0
      %p137 = por %p135, %p136
      %s139 = sadd.s32 %s138, 1
      %p142 = scmp.eq.s32.totalorder %s20, 1
      %p143 = scmp.ne.s32.totalorder %s138, %s140
      %p144 = scmp.eq.s32.totalorder %s20, 0
      %p145 = por %p143, %p144
      %p146 = scmp.ne.s32.totalorder %s138, %s140
      %p147 = scmp.eq.s32.totalorder %s25, 1
      %p148 = por %p146, %p147
      %p149 = scmp.ne.s32.totalorder %s140, %s141
      %p150 = scmp.eq.s32.totalorder %s25, 0
      %p151 = por %p149, %p150
      %p152 = scmp.ne.s32.totalorder %s140, %s141
      %p153 = scmp.eq.s32.totalorder %s26, 1
      %p154 = por %p152, %p153
      %p156 = scmp.ne.s32.totalorder %s141, %s155
      %p157 = scmp.eq.s32.totalorder %s26, 0
      %p158 = por %p156, %p157
      %s160 = sadd.s32 %s159, 1
      %p163 = scmp.eq.s32.totalorder %s20, 1
      %p164 = scmp.ne.s32.totalorder %s159, %s161
      %p165 = scmp.eq.s32.totalorder %s20, 0
      %p166 = por %p164, %p165
      %p167 = scmp.ne.s32.totalorder %s159, %s161
      %p168 = scmp.eq.s32.totalorder %s25, 1
      %p169 = por %p167, %p168
      %p170 = scmp.ne.s32.totalorder %s161, %s162
      %p171 = scmp.eq.s32.totalorder %s25, 0
      %p172 = por %p170, %p171
      %p173 = scmp.ne.s32.totalorder %s161, %s162
      %p174 = scmp.eq.s32.totalorder %s26, 1
      %p175 = por %p173, %p174
      %p177 = scmp.ne.s32.totalorder %s162, %s176
      %p178 = scmp.eq.s32.totalorder %s26, 0
      %p179 = por %p177, %p178
      %s181 = sadd.s32 %s180, 1
      %p184 = scmp.eq.s32.totalorder %s20, 1
      %p185 = scmp.ne.s32.totalorder %s180, %s182
      %p186 = scmp.eq.s32.totalorder %s20, 0
      %p187 = por %p185, %p186
      %p188 = scmp.ne.s32.totalorder %s180, %s182
      %p189 = scmp.eq.s32.totalorder %s25, 1
      %p190 = por %p188, %p189
      %p191 = scmp.ne.s32.totalorder %s182, %s183
      %p192 = scmp.eq.s32.totalorder %s25, 0
      %p193 = por %p191, %p192
      %p194 = scmp.ne.s32.totalorder %s182, %s183
      %p195 = scmp.eq.s32.totalorder %s26, 1
      %p196 = por %p194, %p195
      %p198 = scmp.ne.s32.totalorder %s183, %s197
      %p199 = scmp.eq.s32.totalorder %s26, 0
      %p200 = por %p198, %p199
      %s202 = sadd.s32 %s201, 1
      %p205 = scmp.eq.s32.totalorder %s20, 1
      %p206 = scmp.ne.s32.totalorder %s201, %s203
      %p207 = scmp.eq.s32.totalorder %s20, 0
      %p208 = por %p206, %p207
      %p209 = scmp.ne.s32.totalorder %s201, %s203
      %p210 = scmp.eq.s32.totalorder %s25, 1
      %p211 = por %p209, %p210
      %p212 = scmp.ne.s32.totalorder %s203, %s204
      %p213 = scmp.eq.s32.totalorder %s25, 0
      %p214 = por %p212, %p213
      %p215 = scmp.ne.s32.totalorder %s203, %s204
      %p216 = scmp.eq.s32.totalorder %s26, 1
      %p217 = por %p215, %p216
      %p219 = scmp.ne.s32.totalorder %s204, %s218
      %p220 = scmp.eq.s32.totalorder %s26, 0
      %p221 = por %p219, %p220
      %s223 = sadd.s32 %s222, 1
      %p226 = scmp.eq.s32.totalorder %s20, 1
      %p227 = scmp.ne.s32.totalorder %s222, %s224
      %p228 = scmp.eq.s32.totalorder %s20, 0
      %p229 = por %p227, %p228
      %p230 = scmp.ne.s32.totalorder %s222, %s224
      %p231 = scmp.eq.s32.totalorder %s25, 1
      %p232 = por %p230, %p231
      %p233 = scmp.ne.s32.totalorder %s224, %s225
      %p234 = scmp.eq.s32.totalorder %s25, 0
      %p235 = por %p233, %p234
      %p236 = scmp.ne.s32.totalorder %s224, %s225
      %p237 = scmp.eq.s32.totalorder %s26, 1
      %p238 = por %p236, %p237
      %p240 = scmp.ne.s32.totalorder %s225, %s239
      %p241 = scmp.eq.s32.totalorder %s26, 0
      %p242 = por %p240, %p241
      %s244 = sadd.s32 %s243, 1
      %p247 = scmp.eq.s32.totalorder %s20, 1
      %p248 = scmp.ne.s32.totalorder %s243, %s245
      %p249 = scmp.eq.s32.totalorder %s20, 0
      %p250 = por %p248, %p249
      %p251 = scmp.ne.s32.totalorder %s243, %s245
      %p252 = scmp.eq.s32.totalorder %s25, 1
      %p253 = por %p251, %p252
      %p254 = scmp.ne.s32.totalorder %s245, %s246
      %p255 = scmp.eq.s32.totalorder %s25, 0
      %p256 = por %p254, %p255
      %p257 = scmp.ne.s32.totalorder %s245, %s246
      %p258 = scmp.eq.s32.totalorder %s26, 1
      %p259 = por %p257, %p258
      %p261 = scmp.ne.s32.totalorder %s246, %s260
      %p262 = scmp.eq.s32.totalorder %s26, 0
      %p263 = por %p261, %p262
      %s264 = ssub.s32 %s20, %s27
      %p265 = scmp.eq.s32.totalorder %s264, 0
      %s267 = sadd.s32 %s266, 1
      %s268 = scalar_select %p265, %s266, %s267
      %p271 = pneg %p265
      %p272 = scmp.eq.s32.totalorder %s20, 1
      %p273 = por %p271, %p272
      %p274 = scmp.ne.s32.totalorder %s266, %s269
      %p275 = scmp.eq.s32.totalorder %s20, 0
      %p276 = por %p274, %p275
      %p277 = scmp.ne.s32.totalorder %s266, %s269
      %p278 = scmp.eq.s32.totalorder %s25, 1
      %p279 = por %p277, %p278
      %p280 = scmp.ne.s32.totalorder %s269, %s270
      %p281 = scmp.eq.s32.totalorder %s25, 0
      %p282 = por %p280, %p281
      %p283 = scmp.ne.s32.totalorder %s269, %s270
      %p284 = scmp.eq.s32.totalorder %s26, 1
      %p285 = por %p283, %p284
      %p287 = scmp.ne.s32.totalorder %s270, %s286
      %p288 = scmp.eq.s32.totalorder %s26, 0
      %p289 = por %p287, %p288
      %p290 = scmp.le.s32.totalorder 1, %s20
      %p291 = scmp.lt.s32.totalorder %s20, 3
      %p292 = pnand %p290, %p291
      %p293 = pneg %p292
      // Predicated region
      $region9: #{adapter_forward.1} parent=5 // pred_check
        _
      $region10: #{adapter_forward.1} parent=5 // pred_check_branch
        %295 = sbr.rel (%p292) target = $region12
      $region11: #{adapter_forward.1} parent=5 // pred_region
        %s296 = ssub.s32 %s20, 1
        // Predicated region
        $region13: #{adapter_forward.1} parent=11 // pred_check
          %p297 = pneg %p67
        $region14: #{adapter_forward.1} parent=11 // pred_check_branch
          %299 = sbr.rel (%p297) target = $region16
        $region15: #{adapter_forward.1} parent=11 // pred_region
          _
        $region16: #{adapter_forward.1} parent=11 // pred_fallthru
          _
        // Predicated region
        $region17: #{adapter_forward.1} parent=11 // pred_check
          %p300 = pneg %p88
        $region18: #{adapter_forward.1} parent=11 // pred_check_branch
          %302 = sbr.rel (%p300) target = $region20
        $region19: #{adapter_forward.1} parent=11 // pred_region
          _
        $region20: #{adapter_forward.1} parent=11 // pred_fallthru
          _
        // Predicated region
        $region21: #{adapter_forward.1} parent=11 // pred_check
          %p303 = pneg %p109
        $region22: #{adapter_forward.1} parent=11 // pred_check_branch
          %305 = sbr.rel (%p303) target = $region24
        $region23: #{adapter_forward.1} parent=11 // pred_region
          _
        $region24: #{adapter_forward.1} parent=11 // pred_fallthru
          _
        // Predicated region
        $region25: #{adapter_forward.1} parent=11 // pred_check
          %p306 = pneg %p130
        $region26: #{adapter_forward.1} parent=11 // pred_check_branch
          %308 = sbr.rel (%p306) target = $region28
        $region27: #{adapter_forward.1} parent=11 // pred_region
          _
        $region28: #{adapter_forward.1} parent=11 // pred_fallthru
          _
        // Predicated region
        $region29: #{adapter_forward.1} parent=11 // pred_check
          %p309 = pneg %p151
        $region30: #{adapter_forward.1} parent=11 // pred_check_branch
          %311 = sbr.rel (%p309) target = $region32
        $region31: #{adapter_forward.1} parent=11 // pred_region
          _
        $region32: #{adapter_forward.1} parent=11 // pred_fallthru
          _
        // Predicated region
        $region33: #{adapter_forward.1} parent=11 // pred_check
          %p312 = pneg %p172
        $region34: #{adapter_forward.1} parent=11 // pred_check_branch
          %314 = sbr.rel (%p312) target = $region36
        $region35: #{adapter_forward.1} parent=11 // pred_region
          _
        $region36: #{adapter_forward.1} parent=11 // pred_fallthru
          _
        // Predicated region
        $region37: #{adapter_forward.1} parent=11 // pred_check
          %p315 = pneg %p193
        $region38: #{adapter_forward.1} parent=11 // pred_check_branch
          %317 = sbr.rel (%p315) target = $region40
        $region39: #{adapter_forward.1} parent=11 // pred_region
          _
        $region40: #{adapter_forward.1} parent=11 // pred_fallthru
          _
        // Predicated region
        $region41: #{adapter_forward.1} parent=11 // pred_check
          %p318 = pneg %p214
        $region42: #{adapter_forward.1} parent=11 // pred_check_branch
          %320 = sbr.rel (%p318) target = $region44
        $region43: #{adapter_forward.1} parent=11 // pred_region
          _
        $region44: #{adapter_forward.1} parent=11 // pred_fallthru
          _
        // Predicated region
        $region45: #{adapter_forward.1} parent=11 // pred_check
          %p321 = pneg %p235
        $region46: #{adapter_forward.1} parent=11 // pred_check_branch
          %323 = sbr.rel (%p321) target = $region48
        $region47: #{adapter_forward.1} parent=11 // pred_region
          _
        $region48: #{adapter_forward.1} parent=11 // pred_fallthru
          _
        // Predicated region
        $region49: #{adapter_forward.1} parent=11 // pred_check
          %p324 = pneg %p256
        $region50: #{adapter_forward.1} parent=11 // pred_check_branch
          %326 = sbr.rel (%p324) target = $region52
        $region51: #{adapter_forward.1} parent=11 // pred_region
          _
        $region52: #{adapter_forward.1} parent=11 // pred_fallthru
          _
      $region12: #{adapter_forward.1} parent=5 // pred_fallthru
        _
      %p327 = scmp.lt.s32.totalorder %s20, 2
      // Predicated region
      $region53: #{adapter_forward.1} parent=5 // pred_check
        %p328 = pneg %p327
      $region54: #{adapter_forward.1} parent=5 // pred_check_branch
        %330 = sbr.rel (%p328) target = $region56
      $region55: #{adapter_forward.1} parent=5 // pred_region
        // Predicated region
        $region57: #{adapter_forward.1} parent=55 // pred_check
          %p331 = pneg %p40
        $region58: #{adapter_forward.1} parent=55 // pred_check_branch
          %333 = sbr.rel (%p331) target = $region60
        $region59: #{adapter_forward.1} parent=55 // pred_region
          %p334 = scmp.lt.s32.totalorder %s20, 1
          %s335 = scalar_select %p334, %s20, 1
          %s336 = smul.addr %s335, 6
          %s337 = smul.addr %s336, 8
          %s338 = scalar_lea.vmem %s0, %s337
        $region60: #{adapter_forward.1} parent=55 // pred_fallthru
          _
      $region56: #{adapter_forward.1} parent=5 // pred_fallthru
        _
      %p339 = scmp.le.s32.totalorder 1, %s20
      %p340 = scmp.lt.s32.totalorder %s20, 3
      %p341 = pnand %p339, %p340
      %p342 = pneg %p341
      // Predicated region
      $region61: #{adapter_forward.1} parent=5 // pred_check
        _
      $region62: #{adapter_forward.1} parent=5 // pred_check_branch
        %344 = sbr.rel (%p341) target = $region64
      $region63: #{adapter_forward.1} parent=5 // pred_region
        %s345 = ssub.s32 %s20, 1
        %p346 = scmp.lt.s32.totalorder %s25, 1
        %s347 = scalar_select %p346, %s25, 1
        %s348 = smul.addr %s347, 6
        %s349 = smul.addr %s348, 8
        %s350 = scalar_lea.vmem %s0, %s349
        %p351 = pneg %p46
        %p352 = pneg %p43
        %p353 = pneg %p67
        %p354 = pneg %p64
        %p355 = pneg %p88
        %p356 = pneg %p85
        %p357 = pneg %p109
        %p358 = pneg %p106
        %p359 = pneg %p130
        %p360 = pneg %p127
        %p361 = pneg %p151
        %p362 = pneg %p148
        %p363 = pneg %p172
        %p364 = pneg %p169
        %p365 = pneg %p193
        %p366 = pneg %p190
        %p367 = pneg %p214
        %p368 = pneg %p211
        %p369 = pneg %p235
        %p370 = pneg %p232
        %p371 = pneg %p256
        %p372 = pneg %p253
        %p373 = pneg %p282
        %p374 = pneg %p279
        %s375 = sand.u32 %s269, 1
        %s376 = scalar_lea.sflag [#allocation4], %s375
        %s377 = sand.u32 %s269, 1
        %s378 = smul.addr %s377, 48
        %s379 = scalar_lea.vmem [#allocation3], %s378
        %p380 = scmp.lt.s32.totalorder %s25, 1
        %s381 = scalar_select %p380, %s25, 1
        %s382 = smul.addr %s381, 6
        %s383 = smul.addr %s382, 8
        %s384 = scalar_lea.vmem %s0, %s383
        %v385 = vld [vmem:[%s384] sm:$0xff]
        %v386 = vld [vmem:[%s384 + $0x8] sm:$0xff]
        %v387 = vld [vmem:[%s384 + $0x10] sm:$0xff]
        %v388 = vld [vmem:[%s384 + $0x18] sm:$0xff]
        %v389 = vld [vmem:[%s384 + $0x20] sm:$0xff]
        %v390 = vld [vmem:[%s384 + $0x28] sm:$0xff]
        %v391 = vmax.f32 %v385, 0.0
        %v392 = vmax.f32 %v386, 0.0
        %v393 = vmax.f32 %v387, 0.0
        %v394 = vmax.f32 %v388, 0.0
        %v395 = vmax.f32 %v389, 0.0
        %v396 = vmax.f32 %v390, 0.0
        %v397 = vpack.c.bf16 %v391, %v391
        %v398 = vpack.c.bf16 %v392, %v392
        %v399 = vpack.c.bf16 %v393, %v393
        %v400 = vpack.c.bf16 %v394, %v394
        %v401 = vpack.c.bf16 %v395, %v395
        %v402 = vpack.c.bf16 %v396, %v396
        %v403 = vld [vmem:[%s1] sm:$0xf]
        %v404 = vld [vmem:[%s1 + $0x4] sm:$0xf]
        %v405 = vld [vmem:[%s1 + $0x8] sm:$0xf]
        %v406 = vld [vmem:[%s1 + $0xc] sm:$0xf]
        %v407 = vld [vmem:[%s1 + $0x10] sm:$0xf]
        %v408 = vld [vmem:[%s1 + $0x14] sm:$0xf]
        %v409 = vld [vmem:[%s1 + $0x18] sm:$0xf]
        %v410 = vld [vmem:[%s1 + $0x1c] sm:$0xf]
        %v411 = vld [vmem:[%s1 + $0x20] sm:$0xf]
        %v412 = vld [vmem:[%s1 + $0x24] sm:$0xf]
        %v413 = vld [vmem:[%s1 + $0x28] sm:$0xf]
        %v414 = vld [vmem:[%s1 + $0x2c] sm:$0xf]
        %v415 = vld [vmem:[%s1 + $0x30] sm:$0xf]
        %v416 = vld [vmem:[%s1 + $0x34] sm:$0xf]
        %v417 = vld [vmem:[%s1 + $0x38] sm:$0xf]
        %v418 = vld [vmem:[%s1 + $0x3c] sm:$0xf]
        %v419 = vld [vmem:[%s1 + $0x40] sm:$0xf]
        %v420 = vld [vmem:[%s1 + $0x44] sm:$0xf]
        %v421 = vld [vmem:[%s1 + $0x48] sm:$0xf]
        %v422 = vld [vmem:[%s1 + $0x4c] sm:$0xf]
        %v423 = vld [vmem:[%s1 + $0x50] sm:$0xf]
        %v424 = vld [vmem:[%s1 + $0x54] sm:$0xf]
        %v425 = vld [vmem:[%s1 + $0x58] sm:$0xf]
        %v426 = vld [vmem:[%s1 + $0x5c] sm:$0xf]
        %v427 = vld [vmem:[%s1 + $0x60] sm:$0xf]
        %v428 = vld [vmem:[%s1 + $0x64] sm:$0xf]
        %v429 = vld [vmem:[%s1 + $0x68] sm:$0xf]
        %v430 = vld [vmem:[%s1 + $0x6c] sm:$0xf]
        %v431 = vld [vmem:[%s1 + $0x70] sm:$0xf]
        %v432 = vld [vmem:[%s1 + $0x74] sm:$0xf]
        %v433 = vld [vmem:[%s1 + $0x78] sm:$0xf]
        %v434 = vld [vmem:[%s1 + $0x7c] sm:$0xf]
        %v435 = vld [vmem:[%s1 + $0x80] sm:$0xf]
        %v436 = vld [vmem:[%s1 + $0x84] sm:$0xf]
        %v437 = vld [vmem:[%s1 + $0x88] sm:$0xf]
        %v438 = vld [vmem:[%s1 + $0x8c] sm:$0xf]
        %v439 = vld [vmem:[%s1 + $0x90] sm:$0xf]
        %v440 = vld [vmem:[%s1 + $0x94] sm:$0xf]
        %v441 = vld [vmem:[%s1 + $0x98] sm:$0xf]
        %v442 = vld [vmem:[%s1 + $0x9c] sm:$0xf]
        %v443 = vld [vmem:[%s1 + $0xa0] sm:$0xf]
        %v444 = vld [vmem:[%s1 + $0xa4] sm:$0xf]
        %v445 = vld [vmem:[%s1 + $0xa8] sm:$0xf]
        %v446 = vld [vmem:[%s1 + $0xac] sm:$0xf]
        %v447 = vld [vmem:[%s1 + $0xb0] sm:$0xf]
        %v448 = vld [vmem:[%s1 + $0xb4] sm:$0xf]
        %v449 = vld [vmem:[%s1 + $0xb8] sm:$0xf]
        %v450 = vld [vmem:[%s1 + $0xbc] sm:$0xf]
        %v451 = vld [vmem:[%s1 + $0xc0] sm:$0xf]
        %v452 = vld [vmem:[%s1 + $0xc4] sm:$0xf]
        %v453 = vld [vmem:[%s1 + $0xc8] sm:$0xf]
        %v454 = vld [vmem:[%s1 + $0xcc] sm:$0xf]
        %v455 = vld [vmem:[%s1 + $0xd0] sm:$0xf]
        %v456 = vld [vmem:[%s1 + $0xd4] sm:$0xf]
        %v457 = vld [vmem:[%s1 + $0xd8] sm:$0xf]
        %v458 = vld [vmem:[%s1 + $0xdc] sm:$0xf]
        %v459 = vld [vmem:[%s1 + $0xe0] sm:$0xf]
        %v460 = vld [vmem:[%s1 + $0xe4] sm:$0xf]
        %v461 = vld [vmem:[%s1 + $0xe8] sm:$0xf]
        %v462 = vld [vmem:[%s1 + $0xec] sm:$0xf]
        %v463 = vld [vmem:[%s1 + $0xf0] sm:$0xf]
        %v464 = vld [vmem:[%s1 + $0xf4] sm:$0xf]
        %v465 = vld [vmem:[%s1 + $0xf8] sm:$0xf]
        %v466 = vld [vmem:[%s1 + $0xfc] sm:$0xf]
        %v467 = vld [vmem:[%s1 + $0x100] sm:$0xf]
        %v468 = vld [vmem:[%s1 + $0x104] sm:$0xf]
        %v469 = vld [vmem:[%s1 + $0x108] sm:$0xf]
        %v470 = vld [vmem:[%s1 + $0x10c] sm:$0xf]
        %v471 = vld [vmem:[%s1 + $0x110] sm:$0xf]
        %v472 = vld [vmem:[%s1 + $0x114] sm:$0xf]
        %v473 = vld [vmem:[%s1 + $0x118] sm:$0xf]
        %v474 = vld [vmem:[%s1 + $0x11c] sm:$0xf]
        %v475 = vld [vmem:[%s1 + $0x120] sm:$0xf]
        %v476 = vld [vmem:[%s1 + $0x124] sm:$0xf]
        %v477 = vld [vmem:[%s1 + $0x128] sm:$0xf]
        %v478 = vld [vmem:[%s1 + $0x12c] sm:$0xf]
        %v479 = vld [vmem:[%s1 + $0x130] sm:$0xf]
        %v480 = vld [vmem:[%s1 + $0x134] sm:$0xf]
        %v481 = vld [vmem:[%s1 + $0x138] sm:$0xf]
        %v482 = vld [vmem:[%s1 + $0x13c] sm:$0xf]
        %v483 = vld [vmem:[%s1 + $0x140] sm:$0xf]
        %v484 = vld [vmem:[%s1 + $0x144] sm:$0xf]
        %v485 = vld [vmem:[%s1 + $0x148] sm:$0xf]
        %v486 = vld [vmem:[%s1 + $0x14c] sm:$0xf]
        %v487 = vld [vmem:[%s1 + $0x150] sm:$0xf]
        %v488 = vld [vmem:[%s1 + $0x154] sm:$0xf]
        %v489 = vld [vmem:[%s1 + $0x158] sm:$0xf]
        %v490 = vld [vmem:[%s1 + $0x15c] sm:$0xf]
        %v491 = vld [vmem:[%s1 + $0x160] sm:$0xf]
        %v492 = vld [vmem:[%s1 + $0x164] sm:$0xf]
        %v493 = vld [vmem:[%s1 + $0x168] sm:$0xf]
        %v494 = vld [vmem:[%s1 + $0x16c] sm:$0xf]
        %v495 = vld [vmem:[%s1 + $0x170] sm:$0xf]
        %v496 = vld [vmem:[%s1 + $0x174] sm:$0xf]
        %v497 = vld [vmem:[%s1 + $0x178] sm:$0xf]
        %v498 = vld [vmem:[%s1 + $0x17c] sm:$0xf]
        %v499 = vld [vmem:[%s2] sm:$0x1]
        %v501 = vperm.slane %v499, 0
        %v599 = vunpack.c.l.b16 %v403
        %v600 = vunpack.c.l.b16 %v404
        %v601 = vunpack.c.l.b16 %v405
        %v602 = vunpack.c.l.b16 %v406
        %v603 = vunpack.c.l.b16 %v407
        %v604 = vunpack.c.l.b16 %v408
        %v605 = vunpack.c.l.b16 %v409
        %v606 = vunpack.c.l.b16 %v410
        %v607 = vunpack.c.l.b16 %v411
        %v608 = vunpack.c.l.b16 %v412
        %v609 = vunpack.c.l.b16 %v413
        %v610 = vunpack.c.l.b16 %v414
        %v611 = vunpack.c.l.b16 %v415
        %v612 = vunpack.c.l.b16 %v416
        %v613 = vunpack.c.l.b16 %v417
        %v614 = vunpack.c.l.b16 %v418
        %v615 = vunpack.c.l.b16 %v419
        %v616 = vunpack.c.l.b16 %v420
        %v617 = vunpack.c.l.b16 %v421
        %v618 = vunpack.c.l.b16 %v422
        %v619 = vunpack.c.l.b16 %v423
        %v620 = vunpack.c.l.b16 %v424
        %v621 = vunpack.c.l.b16 %v425
        %v622 = vunpack.c.l.b16 %v426
        %v623 = vunpack.c.l.b16 %v427
        %v624 = vunpack.c.l.b16 %v428
        %v625 = vunpack.c.l.b16 %v429
        %v626 = vunpack.c.l.b16 %v430
        %v627 = vunpack.c.l.b16 %v431
        %v628 = vunpack.c.l.b16 %v432
        %v629 = vunpack.c.l.b16 %v433
        %v630 = vunpack.c.l.b16 %v434
        %v631 = vunpack.c.l.b16 %v435
        %v632 = vunpack.c.l.b16 %v436
        %v633 = vunpack.c.l.b16 %v437
        %v634 = vunpack.c.l.b16 %v438
        %v635 = vunpack.c.l.b16 %v439
        %v636 = vunpack.c.l.b16 %v440
        %v637 = vunpack.c.l.b16 %v441
        %v638 = vunpack.c.l.b16 %v442
        %v639 = vunpack.c.l.b16 %v443
        %v640 = vunpack.c.l.b16 %v444
        %v641 = vunpack.c.l.b16 %v445
        %v642 = vunpack.c.l.b16 %v446
        %v643 = vunpack.c.l.b16 %v447
        %v644 = vunpack.c.l.b16 %v448
        %v645 = vunpack.c.l.b16 %v449
        %v646 = vunpack.c.l.b16 %v450
        %v647 = vunpack.c.l.b16 %v451
        %v648 = vunpack.c.l.b16 %v452
        %v649 = vunpack.c.l.b16 %v453
        %v650 = vunpack.c.l.b16 %v454
        %v651 = vunpack.c.l.b16 %v455
        %v652 = vunpack.c.l.b16 %v456
        %v653 = vunpack.c.l.b16 %v457
        %v654 = vunpack.c.l.b16 %v458
        %v655 = vunpack.c.l.b16 %v459
        %v656 = vunpack.c.l.b16 %v460
        %v657 = vunpack.c.l.b16 %v461
        %v658 = vunpack.c.l.b16 %v462
        %v659 = vunpack.c.l.b16 %v463
        %v660 = vunpack.c.l.b16 %v464
        %v661 = vunpack.c.l.b16 %v465
        %v662 = vunpack.c.l.b16 %v466
        %v663 = vunpack.c.l.b16 %v467
        %v664 = vunpack.c.l.b16 %v468
        %v665 = vunpack.c.l.b16 %v469
        %v666 = vunpack.c.l.b16 %v470
        %v667 = vunpack.c.l.b16 %v471
        %v668 = vunpack.c.l.b16 %v472
        %v669 = vunpack.c.l.b16 %v473
        %v670 = vunpack.c.l.b16 %v474
        %v671 = vunpack.c.l.b16 %v475
        %v672 = vunpack.c.l.b16 %v476
        %v673 = vunpack.c.l.b16 %v477
        %v674 = vunpack.c.l.b16 %v478
        %v675 = vunpack.c.l.b16 %v479
        %v676 = vunpack.c.l.b16 %v480
        %v677 = vunpack.c.l.b16 %v481
        %v678 = vunpack.c.l.b16 %v482
        %v679 = vunpack.c.l.b16 %v483
        %v680 = vunpack.c.l.b16 %v484
        %v681 = vunpack.c.l.b16 %v485
        %v682 = vunpack.c.l.b16 %v486
        %v683 = vunpack.c.l.b16 %v487
        %v684 = vunpack.c.l.b16 %v488
        %v685 = vunpack.c.l.b16 %v489
        %v686 = vunpack.c.l.b16 %v490
        %v687 = vunpack.c.l.b16 %v491
        %v688 = vunpack.c.l.b16 %v492
        %v689 = vunpack.c.l.b16 %v493
        %v690 = vunpack.c.l.b16 %v494
        %v691 = vunpack.c.l.b16 %v495
        %v692 = vunpack.c.l.b16 %v496
        %v693 = vunpack.c.l.b16 %v497
        %v694 = vunpack.c.l.b16 %v498
        %v695 = vpack.c.b16 %v600, %v599
        %v696 = vpack.c.b16 %v602, %v601
        %v697 = vpack.c.b16 %v604, %v603
        %v698 = vpack.c.b16 %v606, %v605
        %v699 = vpack.c.b16 %v608, %v607
        %v700 = vpack.c.b16 %v610, %v609
        %v701 = vpack.c.b16 %v612, %v611
        %v702 = vpack.c.b16 %v614, %v613
        %v703 = vpack.c.b16 %v616, %v615
        %v704 = vpack.c.b16 %v618, %v617
        %v705 = vpack.c.b16 %v620, %v619
        %v706 = vpack.c.b16 %v622, %v621
        %v707 = vpack.c.b16 %v624, %v623
        %v708 = vpack.c.b16 %v626, %v625
        %v709 = vpack.c.b16 %v628, %v627
        %v710 = vpack.c.b16 %v630, %v629
        %v711 = vpack.c.b16 %v632, %v631
        %v712 = vpack.c.b16 %v634, %v633
        %v713 = vpack.c.b16 %v636, %v635
        %v714 = vpack.c.b16 %v638, %v637
        %v715 = vpack.c.b16 %v640, %v639
        %v716 = vpack.c.b16 %v642, %v641
        %v717 = vpack.c.b16 %v644, %v643
        %v718 = vpack.c.b16 %v646, %v645
        %v719 = vpack.c.b16 %v648, %v647
        %v720 = vpack.c.b16 %v650, %v649
        %v721 = vpack.c.b16 %v652, %v651
        %v722 = vpack.c.b16 %v654, %v653
        %v723 = vpack.c.b16 %v656, %v655
        %v724 = vpack.c.b16 %v658, %v657
        %v725 = vpack.c.b16 %v660, %v659
        %v726 = vpack.c.b16 %v662, %v661
        %v727 = vpack.c.b16 %v664, %v663
        %v728 = vpack.c.b16 %v666, %v665
        %v729 = vpack.c.b16 %v668, %v667
        %v730 = vpack.c.b16 %v670, %v669
        %v731 = vpack.c.b16 %v672, %v671
        %v732 = vpack.c.b16 %v674, %v673
        %v733 = vpack.c.b16 %v676, %v675
        %v734 = vpack.c.b16 %v678, %v677
        %v735 = vpack.c.b16 %v680, %v679
        %v736 = vpack.c.b16 %v682, %v681
        %v737 = vpack.c.b16 %v684, %v683
        %v738 = vpack.c.b16 %v686, %v685
        %v739 = vpack.c.b16 %v688, %v687
        %v740 = vpack.c.b16 %v690, %v689
        %v741 = vpack.c.b16 %v692, %v691
        %v742 = vpack.c.b16 %v694, %v693
        %791 = vmatpush.bf16.msra.mxu0 %v702
        %792 = vmatpush.bf16.msra.mxu0 %v701
        %793 = vmatpush.bf16.msra.mxu0 %v700
        %794 = vmatpush.bf16.msra.mxu0 %v699
        %795 = vmatpush.bf16.msra.mxu0 %v698
        %796 = vmatpush.bf16.msra.mxu0 %v697
        %797 = vmatpush.bf16.msra.mxu0 %v696
        %798 = vmatpush.bf16.msra.mxu0 %v695
        %799 = vmatmul.bf16.gmra.mxu0 %v397
        %v800 = vpop.f32.mrf.mxu0
        %v801 = vadd.f32 %v501, %v800
        %v802 = vpop.f32.mrf.mxu0
        %803 = vdwg.mxu0
        %804 = vmatpush.bf16.msra.mxu0 %v710
        %805 = vmatpush.bf16.msra.mxu0 %v709
        %806 = vmatpush.bf16.msra.mxu0 %v708
        %807 = vmatpush.bf16.msra.mxu0 %v707
        %808 = vmatpush.bf16.msra.mxu0 %v706
        %809 = vmatpush.bf16.msra.mxu0 %v705
        %810 = vmatpush.bf16.msra.mxu0 %v704
        %811 = vmatpush.bf16.msra.mxu0 %v703
        %812 = vmatmul.bf16.gmra.mxu0 %v398
        %v813 = vpop.f32.mrf.mxu0
        %v814 = vadd.f32 %v801, %v813
        %v815 = vpop.f32.mrf.mxu0
        %816 = vdwg.mxu0
        %817 = vmatpush.bf16.msra.mxu0 %v718
        %818 = vmatpush.bf16.msra.mxu0 %v717
        %819 = vmatpush.bf16.msra.mxu0 %v716
        %820 = vmatpush.bf16.msra.mxu0 %v715
        %821 = vmatpush.bf16.msra.mxu0 %v714
        %822 = vmatpush.bf16.msra.mxu0 %v713
        %823 = vmatpush.bf16.msra.mxu0 %v712
        %824 = vmatpush.bf16.msra.mxu0 %v711
        %825 = vmatmul.bf16.gmra.mxu0 %v399
        %v826 = vpop.f32.mrf.mxu0
        %v827 = vadd.f32 %v814, %v826
        %v828 = vpop.f32.mrf.mxu0
        %829 = vdwg.mxu0
        %830 = vmatpush.bf16.msra.mxu0 %v726
        %831 = vmatpush.bf16.msra.mxu0 %v725
        %832 = vmatpush.bf16.msra.mxu0 %v724
        %833 = vmatpush.bf16.msra.mxu0 %v723
        %834 = vmatpush.bf16.msra.mxu0 %v722
        %835 = vmatpush.bf16.msra.mxu0 %v721
        %836 = vmatpush.bf16.msra.mxu0 %v720
        %837 = vmatpush.bf16.msra.mxu0 %v719
        %838 = vmatmul.bf16.gmra.mxu0 %v400
        %v839 = vpop.f32.mrf.mxu0
        %v840 = vadd.f32 %v827, %v839
        %v841 = vpop.f32.mrf.mxu0
        %842 = vdwg.mxu0
        %843 = vmatpush.bf16.msra.mxu0 %v734
        %844 = vmatpush.bf16.msra.mxu0 %v733
        %845 = vmatpush.bf16.msra.mxu0 %v732
        %846 = vmatpush.bf16.msra.mxu0 %v731
        %847 = vmatpush.bf16.msra.mxu0 %v730
        %848 = vmatpush.bf16.msra.mxu0 %v729
        %849 = vmatpush.bf16.msra.mxu0 %v728
        %850 = vmatpush.bf16.msra.mxu0 %v727
        %851 = vmatmul.bf16.gmra.mxu0 %v401
        %v852 = vpop.f32.mrf.mxu0
        %v853 = vadd.f32 %v840, %v852
        %v854 = vpop.f32.mrf.mxu0
        %855 = vdwg.mxu0
        %856 = vmatpush.bf16.msra.mxu0 %v742
        %857 = vmatpush.bf16.msra.mxu0 %v741
        %858 = vmatpush.bf16.msra.mxu0 %v740
        %859 = vmatpush.bf16.msra.mxu0 %v739
        %860 = vmatpush.bf16.msra.mxu0 %v738
        %861 = vmatpush.bf16.msra.mxu0 %v737
        %862 = vmatpush.bf16.msra.mxu0 %v736
        %863 = vmatpush.bf16.msra.mxu0 %v735
        %864 = vmatmul.bf16.gmra.mxu0 %v402
        %v865 = vpop.f32.mrf.mxu0
        %v866 = vadd.f32 %v853, %v865
        %v867 = vpop.f32.mrf.mxu0
        %868 = vdwg.mxu0
        %v869 = vpack.c.bf16 %v866, %v866
        %870 = vst [vmem:[#allocation2] sm:$0xf] %v869
        %v871 = vmax.f32 %v866, 0.0
        %v872 = vpack.c.bf16 %v871, %v871
        %873 = vst [vmem:[#allocation2 + $0x4] sm:$0xf] %v872
        %v874 = vlaneseq
        %v875 = vand.u32 %v874, 127
        %vm876 = vcmp.ge.s32.totalorder %v875, 64
        %v877 = vld [vmem:[#allocation2] sm:$0xff]
        %v878 = vld [vmem:[%s3] sm:$0xf]
        %v879 = vld [vmem:[%s3 + $0x4] sm:$0xf]
        %v880 = vld [vmem:[%s3 + $0x8] sm:$0xf]
        %v881 = vld [vmem:[%s3 + $0xc] sm:$0xf]
        %v882 = vld [vmem:[%s3 + $0x10] sm:$0xf]
        %v883 = vld [vmem:[%s3 + $0x14] sm:$0xf]
        %v884 = vld [vmem:[%s3 + $0x18] sm:$0xf]
        %v885 = vld [vmem:[%s3 + $0x1c] sm:$0xf]
        %v886 = vld [vmem:[%s3 + $0x20] sm:$0xf]
        %v887 = vld [vmem:[%s3 + $0x24] sm:$0xf]
        %v888 = vld [vmem:[%s3 + $0x28] sm:$0xf]
        %v889 = vld [vmem:[%s3 + $0x2c] sm:$0xf]
        %v890 = vld [vmem:[%s3 + $0x30] sm:$0xf]
        %v891 = vld [vmem:[%s3 + $0x34] sm:$0xf]
        %v892 = vld [vmem:[%s3 + $0x38] sm:$0xf]
        %v893 = vld [vmem:[%s3 + $0x3c] sm:$0xf]
        %v894 = vld [vmem:[%s3 + $0x40] sm:$0xf]
        %v895 = vld [vmem:[%s3 + $0x44] sm:$0xf]
        %v896 = vld [vmem:[%s3 + $0x48] sm:$0xf]
        %v897 = vld [vmem:[%s3 + $0x4c] sm:$0xf]
        %v898 = vld [vmem:[%s3 + $0x50] sm:$0xf]
        %v899 = vld [vmem:[%s3 + $0x54] sm:$0xf]
        %v900 = vld [vmem:[%s3 + $0x58] sm:$0xf]
        %v901 = vld [vmem:[%s3 + $0x5c] sm:$0xf]
        %v902 = vld [vmem:[%s3 + $0x60] sm:$0xf]
        %v903 = vld [vmem:[%s3 + $0x64] sm:$0xf]
        %v904 = vld [vmem:[%s3 + $0x68] sm:$0xf]
        %v905 = vld [vmem:[%s3 + $0x6c] sm:$0xf]
        %v906 = vld [vmem:[%s3 + $0x70] sm:$0xf]
        %v907 = vld [vmem:[%s3 + $0x74] sm:$0xf]
        %v908 = vld [vmem:[%s3 + $0x78] sm:$0xf]
        %v909 = vld [vmem:[%s3 + $0x7c] sm:$0xf]
        %v910 = vld [vmem:[%s4] sm:$0x1]
        %v912 = vperm.slane %v910, 0
        %v915 = vunpack.c.l.b16 %v877
        %v916 = vunpack.c.h.b16 %v877
        %v917 = vpack.c.b16 %v915, %v915
        %v918 = vpack.c.b16 %v916, %v916
        %v953 = vunpack.c.l.b16 %v878
        %v954 = vunpack.c.l.b16 %v879
        %v955 = vunpack.c.l.b16 %v880
        %v956 = vunpack.c.l.b16 %v881
        %v957 = vunpack.c.l.b16 %v882
        %v958 = vunpack.c.l.b16 %v883
        %v959 = vunpack.c.l.b16 %v884
        %v960 = vunpack.c.l.b16 %v885
        %v961 = vunpack.c.l.b16 %v886
        %v962 = vunpack.c.l.b16 %v887
        %v963 = vunpack.c.l.b16 %v888
        %v964 = vunpack.c.l.b16 %v889
        %v965 = vunpack.c.l.b16 %v890
        %v966 = vunpack.c.l.b16 %v891
        %v967 = vunpack.c.l.b16 %v892
        %v968 = vunpack.c.l.b16 %v893
        %v969 = vunpack.c.l.b16 %v894
        %v970 = vunpack.c.l.b16 %v895
        %v971 = vunpack.c.l.b16 %v896
        %v972 = vunpack.c.l.b16 %v897
        %v973 = vunpack.c.l.b16 %v898
        %v974 = vunpack.c.l.b16 %v899
        %v975 = vunpack.c.l.b16 %v900
        %v976 = vunpack.c.l.b16 %v901
        %v977 = vunpack.c.l.b16 %v902
        %v978 = vunpack.c.l.b16 %v903
        %v979 = vunpack.c.l.b16 %v904
        %v980 = vunpack.c.l.b16 %v905
        %v981 = vunpack.c.l.b16 %v906
        %v982 = vunpack.c.l.b16 %v907
        %v983 = vunpack.c.l.b16 %v908
        %v984 = vunpack.c.l.b16 %v909
        %v985 = vpack.c.b16 %v954, %v953
        %v986 = vpack.c.b16 %v956, %v955
        %v987 = vpack.c.b16 %v958, %v957
        %v988 = vpack.c.b16 %v960, %v959
        %v989 = vpack.c.b16 %v962, %v961
        %v990 = vpack.c.b16 %v964, %v963
        %v991 = vpack.c.b16 %v966, %v965
        %v992 = vpack.c.b16 %v968, %v967
        %v993 = vpack.c.b16 %v970, %v969
        %v994 = vpack.c.b16 %v972, %v971
        %v995 = vpack.c.b16 %v974, %v973
        %v996 = vpack.c.b16 %v976, %v975
        %v997 = vpack.c.b16 %v978, %v977
        %v998 = vpack.c.b16 %v980, %v979
        %v999 = vpack.c.b16 %v982, %v981
        %v1000 = vpack.c.b16 %v984, %v983
        %1017 = vmatpush.bf16.msra.mxu0 %v992
        %1018 = vmatpush.bf16.msra.mxu0 %v991
        %1019 = vmatpush.bf16.msra.mxu0 %v990
        %1020 = vmatpush.bf16.msra.mxu0 %v989
        %1021 = vmatpush.bf16.msra.mxu0 %v988
        %1022 = vmatpush.bf16.msra.mxu0 %v987
        %1023 = vmatpush.bf16.msra.mxu0 %v986
        %1024 = vmatpush.bf16.msra.mxu0 %v985
        %1025 = vmatmul.bf16.gmra.mxu0 %v917
        %v1026 = vpop.f32.mrf.mxu0
        %v1027 = vadd.f32 %v912, %v1026
        %v1028 = vpop.f32.mrf.mxu0
        %1029 = vdwg.mxu0
        %1030 = vmatpush.bf16.msra.mxu0 %v1000
        %1031 = vmatpush.bf16.msra.mxu0 %v999
        %1032 = vmatpush.bf16.msra.mxu0 %v998
        %1033 = vmatpush.bf16.msra.mxu0 %v997
        %1034 = vmatpush.bf16.msra.mxu0 %v996
        %1035 = vmatpush.bf16.msra.mxu0 %v995
        %1036 = vmatpush.bf16.msra.mxu0 %v994
        %1037 = vmatpush.bf16.msra.mxu0 %v993
        %1038 = vmatmul.bf16.gmra.mxu0 %v918
        %v1039 = vpop.f32.mrf.mxu0
        %v1040 = vadd.f32 %v1027, %v1039
        %v1041 = vpop.f32.mrf.mxu0
        %1042 = vdwg.mxu0
        %v1043 = vmax.f32 %v1040, 0.0
        %v1044 = vsel %vm876, %v1043, %v1040
        %v1045 = vpack.c.bf16 %v1044, %v1044
        %1046 = vst [vmem:[#allocation2 + $0x8] sm:$0xf] %v1045
        %v1047 = vld [vmem:[#allocation2] sm:$0xff]
        %v1048 = vld [vmem:[#allocation2 + $0x8] sm:$0xf]
        %v1049 = vld [vmem:[%s5] sm:$0xf]
        %v1050 = vld [vmem:[%s5 + $0x4] sm:$0xf]
        %v1051 = vld [vmem:[%s5 + $0x8] sm:$0xf]
        %v1052 = vld [vmem:[%s5 + $0xc] sm:$0xf]
        %v1053 = vld [vmem:[%s5 + $0x10] sm:$0xf]
        %v1054 = vld [vmem:[%s5 + $0x14] sm:$0xf]
        %v1055 = vld [vmem:[%s5 + $0x18] sm:$0xf]
        %v1056 = vld [vmem:[%s5 + $0x1c] sm:$0xf]
        %v1057 = vld [vmem:[%s5 + $0x20] sm:$0xf]
        %v1058 = vld [vmem:[%s5 + $0x24] sm:$0xf]
        %v1059 = vld [vmem:[%s5 + $0x28] sm:$0xf]
        %v1060 = vld [vmem:[%s5 + $0x2c] sm:$0xf]
        %v1061 = vld [vmem:[%s5 + $0x30] sm:$0xf]
        %v1062 = vld [vmem:[%s5 + $0x34] sm:$0xf]
        %v1063 = vld [vmem:[%s5 + $0x38] sm:$0xf]
        %v1064 = vld [vmem:[%s5 + $0x3c] sm:$0xf]
        %v1065 = vld [vmem:[%s5 + $0x40] sm:$0xf]
        %v1066 = vld [vmem:[%s5 + $0x44] sm:$0xf]
        %v1067 = vld [vmem:[%s5 + $0x48] sm:$0xf]
        %v1068 = vld [vmem:[%s5 + $0x4c] sm:$0xf]
        %v1069 = vld [vmem:[%s5 + $0x50] sm:$0xf]
        %v1070 = vld [vmem:[%s5 + $0x54] sm:$0xf]
        %v1071 = vld [vmem:[%s5 + $0x58] sm:$0xf]
        %v1072 = vld [vmem:[%s5 + $0x5c] sm:$0xf]
        %v1073 = vld [vmem:[%s5 + $0x60] sm:$0xf]
        %v1074 = vld [vmem:[%s5 + $0x64] sm:$0xf]
        %v1075 = vld [vmem:[%s5 + $0x68] sm:$0xf]
        %v1076 = vld [vmem:[%s5 + $0x6c] sm:$0xf]
        %v1077 = vld [vmem:[%s5 + $0x70] sm:$0xf]
        %v1078 = vld [vmem:[%s5 + $0x74] sm:$0xf]
        %v1079 = vld [vmem:[%s5 + $0x78] sm:$0xf]
        %v1080 = vld [vmem:[%s5 + $0x7c] sm:$0xf]
        %v1081 = vld [vmem:[%s5 + $0x80] sm:$0xf]
        %v1082 = vld [vmem:[%s5 + $0x84] sm:$0xf]
        %v1083 = vld [vmem:[%s5 + $0x88] sm:$0xf]
        %v1084 = vld [vmem:[%s5 + $0x8c] sm:$0xf]
        %v1085 = vld [vmem:[%s5 + $0x90] sm:$0xf]
        %v1086 = vld [vmem:[%s5 + $0x94] sm:$0xf]
        %v1087 = vld [vmem:[%s5 + $0x98] sm:$0xf]
        %v1088 = vld [vmem:[%s5 + $0x9c] sm:$0xf]
        %v1089 = vld [vmem:[%s5 + $0xa0] sm:$0xf]
        %v1090 = vld [vmem:[%s5 + $0xa4] sm:$0xf]
        %v1091 = vld [vmem:[%s5 + $0xa8] sm:$0xf]
        %v1092 = vld [vmem:[%s5 + $0xac] sm:$0xf]
        %v1093 = vld [vmem:[%s5 + $0xb0] sm:$0xf]
        %v1094 = vld [vmem:[%s5 + $0xb4] sm:$0xf]
        %v1095 = vld [vmem:[%s5 + $0xb8] sm:$0xf]
        %v1096 = vld [vmem:[%s5 + $0xbc] sm:$0xf]
        %v1097 = vld [vmem:[%s6] sm:$0x1]
        %v1099 = vperm.slane %v1097, 0
        %v1103 = vunpack.c.l.b16 %v1047
        %v1104 = vunpack.c.h.b16 %v1047
        %v1105 = vunpack.c.l.b16 %v1048
        %v1106 = vpack.c.b16 %v1103, %v1103
        %v1107 = vpack.c.b16 %v1104, %v1104
        %v1108 = vpack.c.b16 %v1105, %v1105
        %v1160 = vunpack.c.l.b16 %v1049
        %v1161 = vunpack.c.l.b16 %v1050
        %v1162 = vunpack.c.l.b16 %v1051
        %v1163 = vunpack.c.l.b16 %v1052
        %v1164 = vunpack.c.l.b16 %v1053
        %v1165 = vunpack.c.l.b16 %v1054
        %v1166 = vunpack.c.l.b16 %v1055
        %v1167 = vunpack.c.l.b16 %v1056
        %v1168 = vunpack.c.l.b16 %v1057
        %v1169 = vunpack.c.l.b16 %v1058
        %v1170 = vunpack.c.l.b16 %v1059
        %v1171 = vunpack.c.l.b16 %v1060
        %v1172 = vunpack.c.l.b16 %v1061
        %v1173 = vunpack.c.l.b16 %v1062
        %v1174 = vunpack.c.l.b16 %v1063
        %v1175 = vunpack.c.l.b16 %v1064
        %v1176 = vunpack.c.l.b16 %v1065
        %v1177 = vunpack.c.l.b16 %v1066
        %v1178 = vunpack.c.l.b16 %v1067
        %v1179 = vunpack.c.l.b16 %v1068
        %v1180 = vunpack.c.l.b16 %v1069
        %v1181 = vunpack.c.l.b16 %v1070
        %v1182 = vunpack.c.l.b16 %v1071
        %v1183 = vunpack.c.l.b16 %v1072
        %v1184 = vunpack.c.l.b16 %v1073
        %v1185 = vunpack.c.l.b16 %v1074
        %v1186 = vunpack.c.l.b16 %v1075
        %v1187 = vunpack.c.l.b16 %v1076
        %v1188 = vunpack.c.l.b16 %v1077
        %v1189 = vunpack.c.l.b16 %v1078
        %v1190 = vunpack.c.l.b16 %v1079
        %v1191 = vunpack.c.l.b16 %v1080
        %v1192 = vunpack.c.l.b16 %v1081
        %v1193 = vunpack.c.l.b16 %v1082
        %v1194 = vunpack.c.l.b16 %v1083
        %v1195 = vunpack.c.l.b16 %v1084
        %v1196 = vunpack.c.l.b16 %v1085
        %v1197 = vunpack.c.l.b16 %v1086
        %v1198 = vunpack.c.l.b16 %v1087
        %v1199 = vunpack.c.l.b16 %v1088
        %v1200 = vunpack.c.l.b16 %v1089
        %v1201 = vunpack.c.l.b16 %v1090
        %v1202 = vunpack.c.l.b16 %v1091
        %v1203 = vunpack.c.l.b16 %v1092
        %v1204 = vunpack.c.l.b16 %v1093
        %v1205 = vunpack.c.l.b16 %v1094
        %v1206 = vunpack.c.l.b16 %v1095
        %v1207 = vunpack.c.l.b16 %v1096
        %v1208 = vpack.c.b16 %v1161, %v1160
        %v1209 = vpack.c.b16 %v1163, %v1162
        %v1210 = vpack.c.b16 %v1165, %v1164
        %v1211 = vpack.c.b16 %v1167, %v1166
        %v1212 = vpack.c.b16 %v1169, %v1168
        %v1213 = vpack.c.b16 %v1171, %v1170
        %v1214 = vpack.c.b16 %v1173, %v1172
        %v1215 = vpack.c.b16 %v1175, %v1174
        %v1216 = vpack.c.b16 %v1177, %v1176
        %v1217 = vpack.c.b16 %v1179, %v1178
        %v1218 = vpack.c.b16 %v1181, %v1180
        %v1219 = vpack.c.b16 %v1183, %v1182
        %v1220 = vpack.c.b16 %v1185, %v1184
        %v1221 = vpack.c.b16 %v1187, %v1186
        %v1222 = vpack.c.b16 %v1189, %v1188
        %v1223 = vpack.c.b16 %v1191, %v1190
        %v1224 = vpack.c.b16 %v1193, %v1192
        %v1225 = vpack.c.b16 %v1195, %v1194
        %v1226 = vpack.c.b16 %v1197, %v1196
        %v1227 = vpack.c.b16 %v1199, %v1198
        %v1228 = vpack.c.b16 %v1201, %v1200
        %v1229 = vpack.c.b16 %v1203, %v1202
        %v1230 = vpack.c.b16 %v1205, %v1204
        %v1231 = vpack.c.b16 %v1207, %v1206
        %1256 = vmatpush.bf16.msra.mxu0 %v1215
        %1257 = vmatpush.bf16.msra.mxu0 %v1214
        %1258 = vmatpush.bf16.msra.mxu0 %v1213
        %1259 = vmatpush.bf16.msra.mxu0 %v1212
        %1260 = vmatpush.bf16.msra.mxu0 %v1211
        %1261 = vmatpush.bf16.msra.mxu0 %v1210
        %1262 = vmatpush.bf16.msra.mxu0 %v1209
        %1263 = vmatpush.bf16.msra.mxu0 %v1208
        %1264 = vmatmul.bf16.gmra.mxu0 %v1106
        %v1265 = vpop.f32.mrf.mxu0
        %v1266 = vadd.f32 %v1099, %v1265
        %v1267 = vpop.f32.mrf.mxu0
        %1268 = vdwg.mxu0
        %1269 = vmatpush.bf16.msra.mxu0 %v1223
        %1270 = vmatpush.bf16.msra.mxu0 %v1222
        %1271 = vmatpush.bf16.msra.mxu0 %v1221
        %1272 = vmatpush.bf16.msra.mxu0 %v1220
        %1273 = vmatpush.bf16.msra.mxu0 %v1219
        %1274 = vmatpush.bf16.msra.mxu0 %v1218
        %1275 = vmatpush.bf16.msra.mxu0 %v1217
        %1276 = vmatpush.bf16.msra.mxu0 %v1216
        %1277 = vmatmul.bf16.gmra.mxu0 %v1107
        %v1278 = vpop.f32.mrf.mxu0
        %v1279 = vadd.f32 %v1266, %v1278
        %v1280 = vpop.f32.mrf.mxu0
        %1281 = vdwg.mxu0
        %1282 = vmatpush.bf16.msra.mxu0 %v1231
        %1283 = vmatpush.bf16.msra.mxu0 %v1230
        %1284 = vmatpush.bf16.msra.mxu0 %v1229
        %1285 = vmatpush.bf16.msra.mxu0 %v1228
        %1286 = vmatpush.bf16.msra.mxu0 %v1227
        %1287 = vmatpush.bf16.msra.mxu0 %v1226
        %1288 = vmatpush.bf16.msra.mxu0 %v1225
        %1289 = vmatpush.bf16.msra.mxu0 %v1224
        %1290 = vmatmul.bf16.gmra.mxu0 %v1108
        %v1291 = vpop.f32.mrf.mxu0
        %v1292 = vadd.f32 %v1279, %v1291
        %v1293 = vpop.f32.mrf.mxu0
        %1294 = vdwg.mxu0
        %v1295 = vadd.f32 %v1040, %v1292
        %v1296 = vmax.f32 %v1292, 0.0
        %v1297 = vsel %vm876, %v1296, %v1292
        %v1298 = vpack.c.bf16 %v1297, %v1297
        %1299 = vst [vmem:[#allocation2 + $0xc] sm:$0xf] %v1298
        %v1300 = vld [vmem:[#allocation2] sm:$0xff]
        %v1301 = vld [vmem:[#allocation2 + $0x8] sm:$0xff]
        %v1302 = vld [vmem:[%s7] sm:$0xf]
        %v1303 = vld [vmem:[%s7 + $0x4] sm:$0xf]
        %v1304 = vld [vmem:[%s7 + $0x8] sm:$0xf]
        %v1305 = vld [vmem:[%s7 + $0xc] sm:$0xf]
        %v1306 = vld [vmem:[%s7 + $0x10] sm:$0xf]
        %v1307 = vld [vmem:[%s7 + $0x14] sm:$0xf]
        %v1308 = vld [vmem:[%s7 + $0x18] sm:$0xf]
        %v1309 = vld [vmem:[%s7 + $0x1c] sm:$0xf]
        %v1310 = vld [vmem:[%s7 + $0x20] sm:$0xf]
        %v1311 = vld [vmem:[%s7 + $0x24] sm:$0xf]
        %v1312 = vld [vmem:[%s7 + $0x28] sm:$0xf]
        %v1313 = vld [vmem:[%s7 + $0x2c] sm:$0xf]
        %v1314 = vld [vmem:[%s7 + $0x30] sm:$0xf]
        %v1315 = vld [vmem:[%s7 + $0x34] sm:$0xf]
        %v1316 = vld [vmem:[%s7 + $0x38] sm:$0xf]
        %v1317 = vld [vmem:[%s7 + $0x3c] sm:$0xf]
        %v1318 = vld [vmem:[%s7 + $0x40] sm:$0xf]
        %v1319 = vld [vmem:[%s7 + $0x44] sm:$0xf]
        %v1320 = vld [vmem:[%s7 + $0x48] sm:$0xf]
        %v1321 = vld [vmem:[%s7 + $0x4c] sm:$0xf]
        %v1322 = vld [vmem:[%s7 + $0x50] sm:$0xf]
        %v1323 = vld [vmem:[%s7 + $0x54] sm:$0xf]
        %v1324 = vld [vmem:[%s7 + $0x58] sm:$0xf]
        %v1325 = vld [vmem:[%s7 + $0x5c] sm:$0xf]
        %v1326 = vld [vmem:[%s7 + $0x60] sm:$0xf]
        %v1327 = vld [vmem:[%s7 + $0x64] sm:$0xf]
        %v1328 = vld [vmem:[%s7 + $0x68] sm:$0xf]
        %v1329 = vld [vmem:[%s7 + $0x6c] sm:$0xf]
        %v1330 = vld [vmem:[%s7 + $0x70] sm:$0xf]
        %v1331 = vld [vmem:[%s7 + $0x74] sm:$0xf]
        %v1332 = vld [vmem:[%s7 + $0x78] sm:$0xf]
        %v1333 = vld [vmem:[%s7 + $0x7c] sm:$0xf]
        %v1334 = vld [vmem:[%s7 + $0x80] sm:$0xf]
        %v1335 = vld [vmem:[%s7 + $0x84] sm:$0xf]
        %v1336 = vld [vmem:[%s7 + $0x88] sm:$0xf]
        %v1337 = vld [vmem:[%s7 + $0x8c] sm:$0xf]
        %v1338 = vld [vmem:[%s7 + $0x90] sm:$0xf]
        %v1339 = vld [vmem:[%s7 + $0x94] sm:$0xf]
        %v1340 = vld [vmem:[%s7 + $0x98] sm:$0xf]
        %v1341 = vld [vmem:[%s7 + $0x9c] sm:$0xf]
        %v1342 = vld [vmem:[%s7 + $0xa0] sm:$0xf]
        %v1343 = vld [vmem:[%s7 + $0xa4] sm:$0xf]
        %v1344 = vld [vmem:[%s7 + $0xa8] sm:$0xf]
        %v1345 = vld [vmem:[%s7 + $0xac] sm:$0xf]
        %v1346 = vld [vmem:[%s7 + $0xb0] sm:$0xf]
        %v1347 = vld [vmem:[%s7 + $0xb4] sm:$0xf]
        %v1348 = vld [vmem:[%s7 + $0xb8] sm:$0xf]
        %v1349 = vld [vmem:[%s7 + $0xbc] sm:$0xf]
        %v1350 = vld [vmem:[%s7 + $0xc0] sm:$0xf]
        %v1351 = vld [vmem:[%s7 + $0xc4] sm:$0xf]
        %v1352 = vld [vmem:[%s7 + $0xc8] sm:$0xf]
        %v1353 = vld [vmem:[%s7 + $0xcc] sm:$0xf]
        %v1354 = vld [vmem:[%s7 + $0xd0] sm:$0xf]
        %v1355 = vld [vmem:[%s7 + $0xd4] sm:$0xf]
        %v1356 = vld [vmem:[%s7 + $0xd8] sm:$0xf]
        %v1357 = vld [vmem:[%s7 + $0xdc] sm:$0xf]
        %v1358 = vld [vmem:[%s7 + $0xe0] sm:$0xf]
        %v1359 = vld [vmem:[%s7 + $0xe4] sm:$0xf]
        %v1360 = vld [vmem:[%s7 + $0xe8] sm:$0xf]
        %v1361 = vld [vmem:[%s7 + $0xec] sm:$0xf]
        %v1362 = vld [vmem:[%s7 + $0xf0] sm:$0xf]
        %v1363 = vld [vmem:[%s7 + $0xf4] sm:$0xf]
        %v1364 = vld [vmem:[%s7 + $0xf8] sm:$0xf]
        %v1365 = vld [vmem:[%s7 + $0xfc] sm:$0xf]
        %v1366 = vld [vmem:[%s8] sm:$0x1]
        %v1368 = vperm.slane %v1366, 0
        %v1372 = vunpack.c.l.b16 %v1300
        %v1373 = vunpack.c.h.b16 %v1300
        %v1374 = vunpack.c.l.b16 %v1301
        %v1375 = vunpack.c.h.b16 %v1301
        %v1376 = vpack.c.b16 %v1372, %v1372
        %v1377 = vpack.c.b16 %v1373, %v1373
        %v1378 = vpack.c.b16 %v1374, %v1374
        %v1379 = vpack.c.b16 %v1375, %v1375
        %v1448 = vunpack.c.l.b16 %v1302
        %v1449 = vunpack.c.l.b16 %v1303
        %v1450 = vunpack.c.l.b16 %v1304
        %v1451 = vunpack.c.l.b16 %v1305
        %v1452 = vunpack.c.l.b16 %v1306
        %v1453 = vunpack.c.l.b16 %v1307
        %v1454 = vunpack.c.l.b16 %v1308
        %v1455 = vunpack.c.l.b16 %v1309
        %v1456 = vunpack.c.l.b16 %v1310
        %v1457 = vunpack.c.l.b16 %v1311
        %v1458 = vunpack.c.l.b16 %v1312
        %v1459 = vunpack.c.l.b16 %v1313
        %v1460 = vunpack.c.l.b16 %v1314
        %v1461 = vunpack.c.l.b16 %v1315
        %v1462 = vunpack.c.l.b16 %v1316
        %v1463 = vunpack.c.l.b16 %v1317
        %v1464 = vunpack.c.l.b16 %v1318
        %v1465 = vunpack.c.l.b16 %v1319
        %v1466 = vunpack.c.l.b16 %v1320
        %v1467 = vunpack.c.l.b16 %v1321
        %v1468 = vunpack.c.l.b16 %v1322
        %v1469 = vunpack.c.l.b16 %v1323
        %v1470 = vunpack.c.l.b16 %v1324
        %v1471 = vunpack.c.l.b16 %v1325
        %v1472 = vunpack.c.l.b16 %v1326
        %v1473 = vunpack.c.l.b16 %v1327
        %v1474 = vunpack.c.l.b16 %v1328
        %v1475 = vunpack.c.l.b16 %v1329
        %v1476 = vunpack.c.l.b16 %v1330
        %v1477 = vunpack.c.l.b16 %v1331
        %v1478 = vunpack.c.l.b16 %v1332
        %v1479 = vunpack.c.l.b16 %v1333
        %v1480 = vunpack.c.l.b16 %v1334
        %v1481 = vunpack.c.l.b16 %v1335
        %v1482 = vunpack.c.l.b16 %v1336
        %v1483 = vunpack.c.l.b16 %v1337
        %v1484 = vunpack.c.l.b16 %v1338
        %v1485 = vunpack.c.l.b16 %v1339
        %v1486 = vunpack.c.l.b16 %v1340
        %v1487 = vunpack.c.l.b16 %v1341
        %v1488 = vunpack.c.l.b16 %v1342
        %v1489 = vunpack.c.l.b16 %v1343
        %v1490 = vunpack.c.l.b16 %v1344
        %v1491 = vunpack.c.l.b16 %v1345
        %v1492 = vunpack.c.l.b16 %v1346
        %v1493 = vunpack.c.l.b16 %v1347
        %v1494 = vunpack.c.l.b16 %v1348
        %v1495 = vunpack.c.l.b16 %v1349
        %v1496 = vunpack.c.l.b16 %v1350
        %v1497 = vunpack.c.l.b16 %v1351
        %v1498 = vunpack.c.l.b16 %v1352
        %v1499 = vunpack.c.l.b16 %v1353
        %v1500 = vunpack.c.l.b16 %v1354
        %v1501 = vunpack.c.l.b16 %v1355
        %v1502 = vunpack.c.l.b16 %v1356
        %v1503 = vunpack.c.l.b16 %v1357
        %v1504 = vunpack.c.l.b16 %v1358
        %v1505 = vunpack.c.l.b16 %v1359
        %v1506 = vunpack.c.l.b16 %v1360
        %v1507 = vunpack.c.l.b16 %v1361
        %v1508 = vunpack.c.l.b16 %v1362
        %v1509 = vunpack.c.l.b16 %v1363
        %v1510 = vunpack.c.l.b16 %v1364
        %v1511 = vunpack.c.l.b16 %v1365
        %v1512 = vpack.c.b16 %v1449, %v1448
        %v1513 = vpack.c.b16 %v1451, %v1450
        %v1514 = vpack.c.b16 %v1453, %v1452
        %v1515 = vpack.c.b16 %v1455, %v1454
        %v1516 = vpack.c.b16 %v1457, %v1456
        %v1517 = vpack.c.b16 %v1459, %v1458
        %v1518 = vpack.c.b16 %v1461, %v1460
        %v1519 = vpack.c.b16 %v1463, %v1462
        %v1520 = vpack.c.b16 %v1465, %v1464
        %v1521 = vpack.c.b16 %v1467, %v1466
        %v1522 = vpack.c.b16 %v1469, %v1468
        %v1523 = vpack.c.b16 %v1471, %v1470
        %v1524 = vpack.c.b16 %v1473, %v1472
        %v1525 = vpack.c.b16 %v1475, %v1474
        %v1526 = vpack.c.b16 %v1477, %v1476
        %v1527 = vpack.c.b16 %v1479, %v1478
        %v1528 = vpack.c.b16 %v1481, %v1480
        %v1529 = vpack.c.b16 %v1483, %v1482
        %v1530 = vpack.c.b16 %v1485, %v1484
        %v1531 = vpack.c.b16 %v1487, %v1486
        %v1532 = vpack.c.b16 %v1489, %v1488
        %v1533 = vpack.c.b16 %v1491, %v1490
        %v1534 = vpack.c.b16 %v1493, %v1492
        %v1535 = vpack.c.b16 %v1495, %v1494
        %v1536 = vpack.c.b16 %v1497, %v1496
        %v1537 = vpack.c.b16 %v1499, %v1498
        %v1538 = vpack.c.b16 %v1501, %v1500
        %v1539 = vpack.c.b16 %v1503, %v1502
        %v1540 = vpack.c.b16 %v1505, %v1504
        %v1541 = vpack.c.b16 %v1507, %v1506
        %v1542 = vpack.c.b16 %v1509, %v1508
        %v1543 = vpack.c.b16 %v1511, %v1510
        %1576 = vmatpush.bf16.msra.mxu0 %v1519
        %1577 = vmatpush.bf16.msra.mxu0 %v1518
        %1578 = vmatpush.bf16.msra.mxu0 %v1517
        %1579 = vmatpush.bf16.msra.mxu0 %v1516
        %1580 = vmatpush.bf16.msra.mxu0 %v1515
        %1581 = vmatpush.bf16.msra.mxu0 %v1514
        %1582 = vmatpush.bf16.msra.mxu0 %v1513
        %1583 = vmatpush.bf16.msra.mxu0 %v1512
        %1584 = vmatmul.bf16.gmra.mxu0 %v1376
        %v1585 = vpop.f32.mrf.mxu0
        %v1586 = vadd.f32 %v1368, %v1585
        %v1587 = vpop.f32.mrf.mxu0
        %1588 = vdwg.mxu0
        %1589 = vmatpush.bf16.msra.mxu0 %v1527
        %1590 = vmatpush.bf16.msra.mxu0 %v1526
        %1591 = vmatpush.bf16.msra.mxu0 %v1525
        %1592 = vmatpush.bf16.msra.mxu0 %v1524
        %1593 = vmatpush.bf16.msra.mxu0 %v1523
        %1594 = vmatpush.bf16.msra.mxu0 %v1522
        %1595 = vmatpush.bf16.msra.mxu0 %v1521
        %1596 = vmatpush.bf16.msra.mxu0 %v1520
        %1597 = vmatmul.bf16.gmra.mxu0 %v1377
        %v1598 = vpop.f32.mrf.mxu0
        %v1599 = vadd.f32 %v1586, %v1598
        %v1600 = vpop.f32.mrf.mxu0
        %1601 = vdwg.mxu0
        %1602 = vmatpush.bf16.msra.mxu0 %v1535
        %1603 = vmatpush.bf16.msra.mxu0 %v1534
        %1604 = vmatpush.bf16.msra.mxu0 %v1533
        %1605 = vmatpush.bf16.msra.mxu0 %v1532
        %1606 = vmatpush.bf16.msra.mxu0 %v1531
        %1607 = vmatpush.bf16.msra.mxu0 %v1530
        %1608 = vmatpush.bf16.msra.mxu0 %v1529
        %1609 = vmatpush.bf16.msra.mxu0 %v1528
        %1610 = vmatmul.bf16.gmra.mxu0 %v1378
        %v1611 = vpop.f32.mrf.mxu0
        %v1612 = vadd.f32 %v1599, %v1611
        %v1613 = vpop.f32.mrf.mxu0
        %1614 = vdwg.mxu0
        %1615 = vmatpush.bf16.msra.mxu0 %v1543
        %1616 = vmatpush.bf16.msra.mxu0 %v1542
        %1617 = vmatpush.bf16.msra.mxu0 %v1541
        %1618 = vmatpush.bf16.msra.mxu0 %v1540
        %1619 = vmatpush.bf16.msra.mxu0 %v1539
        %1620 = vmatpush.bf16.msra.mxu0 %v1538
        %1621 = vmatpush.bf16.msra.mxu0 %v1537
        %1622 = vmatpush.bf16.msra.mxu0 %v1536
        %1623 = vmatmul.bf16.gmra.mxu0 %v1379
        %v1624 = vpop.f32.mrf.mxu0
        %v1625 = vadd.f32 %v1612, %v1624
        %v1626 = vpop.f32.mrf.mxu0
        %1627 = vdwg.mxu0
        %v1628 = vadd.f32 %v1295, %v1625
        %v1629 = vpack.c.bf16 %v1628, %v1628
        %v1630 = vld [vmem:[%s9] sm:$0xff]
        %v1631 = vld [vmem:[%s9 + $0x8] sm:$0xff]
        %v1632 = vld [vmem:[%s9 + $0x10] sm:$0xff]
        %v1633 = vld [vmem:[%s9 + $0x18] sm:$0xff]
        %v1634 = vld [vmem:[%s9 + $0x20] sm:$0xff]
        %v1635 = vld [vmem:[%s9 + $0x28] sm:$0xff]
        %v1636 = vld [vmem:[%s9 + $0x30] sm:$0xff]
        %v1637 = vld [vmem:[%s9 + $0x38] sm:$0xff]
        %v1638 = vld [vmem:[%s9 + $0x40] sm:$0xff]
        %v1639 = vld [vmem:[%s9 + $0x48] sm:$0xff]
        %v1640 = vld [vmem:[%s9 + $0x50] sm:$0xff]
        %v1641 = vld [vmem:[%s9 + $0x58] sm:$0xff]
        %v1642 = vld [vmem:[%s9 + $0x60] sm:$0xff]
        %v1643 = vld [vmem:[%s9 + $0x68] sm:$0xff]
        %v1644 = vld [vmem:[%s9 + $0x70] sm:$0xff]
        %v1645 = vld [vmem:[%s9 + $0x78] sm:$0xff]
        %v1646 = vld [vmem:[%s9 + $0x80] sm:$0xff]
        %v1647 = vld [vmem:[%s9 + $0x88] sm:$0xff]
        %v1648 = vld [vmem:[%s9 + $0x90] sm:$0xff]
        %v1649 = vld [vmem:[%s9 + $0x98] sm:$0xff]
        %v1650 = vld [vmem:[%s9 + $0xa0] sm:$0xff]
        %v1651 = vld [vmem:[%s9 + $0xa8] sm:$0xff]
        %v1652 = vld [vmem:[%s9 + $0xb0] sm:$0xff]
        %v1653 = vld [vmem:[%s9 + $0xb8] sm:$0xff]
        %v1654 = vld [vmem:[%s9 + $0xc0] sm:$0xff]
        %v1655 = vld [vmem:[%s9 + $0xc8] sm:$0xff]
        %v1656 = vld [vmem:[%s9 + $0xd0] sm:$0xff]
        %v1657 = vld [vmem:[%s9 + $0xd8] sm:$0xff]
        %v1658 = vld [vmem:[%s9 + $0xe0] sm:$0xff]
        %v1659 = vld [vmem:[%s9 + $0xe8] sm:$0xff]
        %v1660 = vld [vmem:[%s9 + $0xf0] sm:$0xff]
        %v1661 = vld [vmem:[%s9 + $0xf8] sm:$0xff]
        %v1662 = vld [vmem:[%s9 + $0x100] sm:$0xff]
        %v1663 = vld [vmem:[%s9 + $0x108] sm:$0xff]
        %v1664 = vld [vmem:[%s9 + $0x110] sm:$0xff]
        %v1665 = vld [vmem:[%s9 + $0x118] sm:$0xff]
        %v1666 = vld [vmem:[%s9 + $0x120] sm:$0xff]
        %v1667 = vld [vmem:[%s9 + $0x128] sm:$0xff]
        %v1668 = vld [vmem:[%s9 + $0x130] sm:$0xff]
        %v1669 = vld [vmem:[%s9 + $0x138] sm:$0xff]
        %v1670 = vld [vmem:[%s9 + $0x140] sm:$0xff]
        %v1671 = vld [vmem:[%s9 + $0x148] sm:$0xff]
        %v1672 = vld [vmem:[%s9 + $0x150] sm:$0xff]
        %v1673 = vld [vmem:[%s9 + $0x158] sm:$0xff]
        %v1674 = vld [vmem:[%s9 + $0x160] sm:$0xff]
        %v1675 = vld [vmem:[%s9 + $0x168] sm:$0xff]
        %v1676 = vld [vmem:[%s9 + $0x170] sm:$0xff]
        %v1677 = vld [vmem:[%s9 + $0x178] sm:$0xff]
        %v1678 = vld [vmem:[%s10] sm:$0x3f]
        %v1680 = vperm.slane %v1678, 0
        %v1681 = vperm.slane %v1678, 1
        %v1682 = vperm.slane %v1678, 2
        %v1683 = vperm.slane %v1678, 3
        %v1684 = vperm.slane %v1678, 4
        %v1685 = vperm.slane %v1678, 5
        %v1740 = vunpack.c.l.b16 %v1630
        %v1741 = vunpack.c.h.b16 %v1630
        %v1742 = vunpack.c.l.b16 %v1631
        %v1743 = vunpack.c.h.b16 %v1631
        %v1744 = vunpack.c.l.b16 %v1632
        %v1745 = vunpack.c.h.b16 %v1632
        %v1746 = vunpack.c.l.b16 %v1633
        %v1747 = vunpack.c.h.b16 %v1633
        %v1748 = vunpack.c.l.b16 %v1634
        %v1749 = vunpack.c.h.b16 %v1634
        %v1750 = vunpack.c.l.b16 %v1635
        %v1751 = vunpack.c.h.b16 %v1635
        %v1752 = vunpack.c.l.b16 %v1636
        %v1753 = vunpack.c.h.b16 %v1636
        %v1754 = vunpack.c.l.b16 %v1637
        %v1755 = vunpack.c.h.b16 %v1637
        %v1756 = vunpack.c.l.b16 %v1638
        %v1757 = vunpack.c.h.b16 %v1638
        %v1758 = vunpack.c.l.b16 %v1639
        %v1759 = vunpack.c.h.b16 %v1639
        %v1760 = vunpack.c.l.b16 %v1640
        %v1761 = vunpack.c.h.b16 %v1640
        %v1762 = vunpack.c.l.b16 %v1641
        %v1763 = vunpack.c.h.b16 %v1641
        %v1764 = vunpack.c.l.b16 %v1642
        %v1765 = vunpack.c.h.b16 %v1642
        %v1766 = vunpack.c.l.b16 %v1643
        %v1767 = vunpack.c.h.b16 %v1643
        %v1768 = vunpack.c.l.b16 %v1644
        %v1769 = vunpack.c.h.b16 %v1644
        %v1770 = vunpack.c.l.b16 %v1645
        %v1771 = vunpack.c.h.b16 %v1645
        %v1772 = vunpack.c.l.b16 %v1646
        %v1773 = vunpack.c.h.b16 %v1646
        %v1774 = vunpack.c.l.b16 %v1647
        %v1775 = vunpack.c.h.b16 %v1647
        %v1776 = vunpack.c.l.b16 %v1648
        %v1777 = vunpack.c.h.b16 %v1648
        %v1778 = vunpack.c.l.b16 %v1649
        %v1779 = vunpack.c.h.b16 %v1649
        %v1780 = vunpack.c.l.b16 %v1650
        %v1781 = vunpack.c.h.b16 %v1650
        %v1782 = vunpack.c.l.b16 %v1651
        %v1783 = vunpack.c.h.b16 %v1651
        %v1784 = vunpack.c.l.b16 %v1652
        %v1785 = vunpack.c.h.b16 %v1652
        %v1786 = vunpack.c.l.b16 %v1653
        %v1787 = vunpack.c.h.b16 %v1653
        %v1788 = vunpack.c.l.b16 %v1654
        %v1789 = vunpack.c.h.b16 %v1654
        %v1790 = vunpack.c.l.b16 %v1655
        %v1791 = vunpack.c.h.b16 %v1655
        %v1792 = vunpack.c.l.b16 %v1656
        %v1793 = vunpack.c.h.b16 %v1656
        %v1794 = vunpack.c.l.b16 %v1657
        %v1795 = vunpack.c.h.b16 %v1657
        %v1796 = vunpack.c.l.b16 %v1658
        %v1797 = vunpack.c.h.b16 %v1658
        %v1798 = vunpack.c.l.b16 %v1659
        %v1799 = vunpack.c.h.b16 %v1659
        %v1800 = vunpack.c.l.b16 %v1660
        %v1801 = vunpack.c.h.b16 %v1660
        %v1802 = vunpack.c.l.b16 %v1661
        %v1803 = vunpack.c.h.b16 %v1661
        %v1804 = vunpack.c.l.b16 %v1662
        %v1805 = vunpack.c.h.b16 %v1662
        %v1806 = vunpack.c.l.b16 %v1663
        %v1807 = vunpack.c.h.b16 %v1663
        %v1808 = vunpack.c.l.b16 %v1664
        %v1809 = vunpack.c.h.b16 %v1664
        %v1810 = vunpack.c.l.b16 %v1665
        %v1811 = vunpack.c.h.b16 %v1665
        %v1812 = vunpack.c.l.b16 %v1666
        %v1813 = vunpack.c.h.b16 %v1666
        %v1814 = vunpack.c.l.b16 %v1667
        %v1815 = vunpack.c.h.b16 %v1667
        %v1816 = vunpack.c.l.b16 %v1668
        %v1817 = vunpack.c.h.b16 %v1668
        %v1818 = vunpack.c.l.b16 %v1669
        %v1819 = vunpack.c.h.b16 %v1669
        %v1820 = vunpack.c.l.b16 %v1670
        %v1821 = vunpack.c.h.b16 %v1670
        %v1822 = vunpack.c.l.b16 %v1671
        %v1823 = vunpack.c.h.b16 %v1671
        %v1824 = vunpack.c.l.b16 %v1672
        %v1825 = vunpack.c.h.b16 %v1672
        %v1826 = vunpack.c.l.b16 %v1673
        %v1827 = vunpack.c.h.b16 %v1673
        %v1828 = vunpack.c.l.b16 %v1674
        %v1829 = vunpack.c.h.b16 %v1674
        %v1830 = vunpack.c.l.b16 %v1675
        %v1831 = vunpack.c.h.b16 %v1675
        %v1832 = vunpack.c.l.b16 %v1676
        %v1833 = vunpack.c.h.b16 %v1676
        %v1834 = vunpack.c.l.b16 %v1677
        %v1835 = vunpack.c.h.b16 %v1677
        %v1836 = vpack.c.b16 %v1746, %v1740
        %v1837 = vpack.c.b16 %v1747, %v1741
        %v1838 = vpack.c.b16 %v1748, %v1742
        %v1839 = vpack.c.b16 %v1749, %v1743
        %v1840 = vpack.c.b16 %v1750, %v1744
        %v1841 = vpack.c.b16 %v1751, %v1745
        %v1842 = vpack.c.b16 %v1758, %v1752
        %v1843 = vpack.c.b16 %v1759, %v1753
        %v1844 = vpack.c.b16 %v1760, %v1754
        %v1845 = vpack.c.b16 %v1761, %v1755
        %v1846 = vpack.c.b16 %v1762, %v1756
        %v1847 = vpack.c.b16 %v1763, %v1757
        %v1848 = vpack.c.b16 %v1770, %v1764
        %v1849 = vpack.c.b16 %v1771, %v1765
        %v1850 = vpack.c.b16 %v1772, %v1766
        %v1851 = vpack.c.b16 %v1773, %v1767
        %v1852 = vpack.c.b16 %v1774, %v1768
        %v1853 = vpack.c.b16 %v1775, %v1769
        %v1854 = vpack.c.b16 %v1782, %v1776
        %v1855 = vpack.c.b16 %v1783, %v1777
        %v1856 = vpack.c.b16 %v1784, %v1778
        %v1857 = vpack.c.b16 %v1785, %v1779
        %v1858 = vpack.c.b16 %v1786, %v1780
        %v1859 = vpack.c.b16 %v1787, %v1781
        %v1860 = vpack.c.b16 %v1794, %v1788
        %v1861 = vpack.c.b16 %v1795, %v1789
        %v1862 = vpack.c.b16 %v1796, %v1790
        %v1863 = vpack.c.b16 %v1797, %v1791
        %v1864 = vpack.c.b16 %v1798, %v1792
        %v1865 = vpack.c.b16 %v1799, %v1793
        %v1866 = vpack.c.b16 %v1806, %v1800
        %v1867 = vpack.c.b16 %v1807, %v1801
        %v1868 = vpack.c.b16 %v1808, %v1802
        %v1869 = vpack.c.b16 %v1809, %v1803
        %v1870 = vpack.c.b16 %v1810, %v1804
        %v1871 = vpack.c.b16 %v1811, %v1805
        %v1872 = vpack.c.b16 %v1818, %v1812
        %v1873 = vpack.c.b16 %v1819, %v1813
        %v1874 = vpack.c.b16 %v1820, %v1814
        %v1875 = vpack.c.b16 %v1821, %v1815
        %v1876 = vpack.c.b16 %v1822, %v1816
        %v1877 = vpack.c.b16 %v1823, %v1817
        %v1878 = vpack.c.b16 %v1830, %v1824
        %v1879 = vpack.c.b16 %v1831, %v1825
        %v1880 = vpack.c.b16 %v1832, %v1826
        %v1881 = vpack.c.b16 %v1833, %v1827
        %v1882 = vpack.c.b16 %v1834, %v1828
        %v1883 = vpack.c.b16 %v1835, %v1829
        %1932 = vmatpush.bf16.msra.mxu0 %v1878
        %1933 = vmatpush.bf16.msra.mxu0 %v1872
        %1934 = vmatpush.bf16.msra.mxu0 %v1866
        %1935 = vmatpush.bf16.msra.mxu0 %v1860
        %1936 = vmatpush.bf16.msra.mxu0 %v1854
        %1937 = vmatpush.bf16.msra.mxu0 %v1848
        %1938 = vmatpush.bf16.msra.mxu0 %v1842
        %1939 = vmatpush.bf16.msra.mxu0 %v1836
        %1940 = vmatmul.bf16.gmra.mxu0 %v1629
        %v1941 = vpop.f32.mrf.mxu0
        %v1942 = vadd.f32 %v1680, %v1941
        %v1943 = vpop.f32.mrf.mxu0
        %1944 = vdwg.mxu0
        %1945 = vmatpush.bf16.msra.mxu0 %v1879
        %1946 = vmatpush.bf16.msra.mxu0 %v1873
        %1947 = vmatpush.bf16.msra.mxu0 %v1867
        %1948 = vmatpush.bf16.msra.mxu0 %v1861
        %1949 = vmatpush.bf16.msra.mxu0 %v1855
        %1950 = vmatpush.bf16.msra.mxu0 %v1849
        %1951 = vmatpush.bf16.msra.mxu0 %v1843
        %1952 = vmatpush.bf16.msra.mxu0 %v1837
        %1953 = vmatmul.bf16.gmra.mxu0 %v1629
        %v1954 = vpop.f32.mrf.mxu0
        %v1955 = vadd.f32 %v1681, %v1954
        %v1956 = vpop.f32.mrf.mxu0
        %1957 = vdwg.mxu0
        %1958 = vmatpush.bf16.msra.mxu0 %v1880
        %1959 = vmatpush.bf16.msra.mxu0 %v1874
        %1960 = vmatpush.bf16.msra.mxu0 %v1868
        %1961 = vmatpush.bf16.msra.mxu0 %v1862
        %1962 = vmatpush.bf16.msra.mxu0 %v1856
        %1963 = vmatpush.bf16.msra.mxu0 %v1850
        %1964 = vmatpush.bf16.msra.mxu0 %v1844
        %1965 = vmatpush.bf16.msra.mxu0 %v1838
        %1966 = vmatmul.bf16.gmra.mxu0 %v1629
        %v1967 = vpop.f32.mrf.mxu0
        %v1968 = vadd.f32 %v1682, %v1967
        %v1969 = vpop.f32.mrf.mxu0
        %1970 = vdwg.mxu0
        %1971 = vmatpush.bf16.msra.mxu0 %v1881
        %1972 = vmatpush.bf16.msra.mxu0 %v1875
        %1973 = vmatpush.bf16.msra.mxu0 %v1869
        %1974 = vmatpush.bf16.msra.mxu0 %v1863
        %1975 = vmatpush.bf16.msra.mxu0 %v1857
        %1976 = vmatpush.bf16.msra.mxu0 %v1851
        %1977 = vmatpush.bf16.msra.mxu0 %v1845
        %1978 = vmatpush.bf16.msra.mxu0 %v1839
        %1979 = vmatmul.bf16.gmra.mxu0 %v1629
        %v1980 = vpop.f32.mrf.mxu0
        %v1981 = vadd.f32 %v1683, %v1980
        %v1982 = vpop.f32.mrf.mxu0
        %1983 = vdwg.mxu0
        %1984 = vmatpush.bf16.msra.mxu0 %v1882
        %1985 = vmatpush.bf16.msra.mxu0 %v1876
        %1986 = vmatpush.bf16.msra.mxu0 %v1870
        %1987 = vmatpush.bf16.msra.mxu0 %v1864
        %1988 = vmatpush.bf16.msra.mxu0 %v1858
        %1989 = vmatpush.bf16.msra.mxu0 %v1852
        %1990 = vmatpush.bf16.msra.mxu0 %v1846
        %1991 = vmatpush.bf16.msra.mxu0 %v1840
        %1992 = vmatmul.bf16.gmra.mxu0 %v1629
        %v1993 = vpop.f32.mrf.mxu0
        %v1994 = vadd.f32 %v1684, %v1993
        %v1995 = vpop.f32.mrf.mxu0
        %1996 = vdwg.mxu0
        %1997 = vmatpush.bf16.msra.mxu0 %v1883
        %1998 = vmatpush.bf16.msra.mxu0 %v1877
        %1999 = vmatpush.bf16.msra.mxu0 %v1871
        %2000 = vmatpush.bf16.msra.mxu0 %v1865
        %2001 = vmatpush.bf16.msra.mxu0 %v1859
        %2002 = vmatpush.bf16.msra.mxu0 %v1853
        %2003 = vmatpush.bf16.msra.mxu0 %v1847
        %2004 = vmatpush.bf16.msra.mxu0 %v1841
        %2005 = vmatmul.bf16.gmra.mxu0 %v1629
        %v2006 = vpop.f32.mrf.mxu0
        %v2007 = vadd.f32 %v1685, %v2006
        %v2008 = vpop.f32.mrf.mxu0
        %2009 = vdwg.mxu0
        %v2010 = vadd.f32 %v1942, %v385
        %v2011 = vadd.f32 %v1955, %v386
        %v2012 = vadd.f32 %v1968, %v387
        %v2013 = vadd.f32 %v1981, %v388
        %v2014 = vadd.f32 %v1994, %v389
        %v2015 = vadd.f32 %v2007, %v390
        %2016 = vst [vmem:[%s379] sm:$0xff] %v2010
        %2017 = vst [vmem:[%s379 + $0x8] sm:$0xff] %v2011
        %2018 = vst [vmem:[%s379 + $0x10] sm:$0xff] %v2012
        %2019 = vst [vmem:[%s379 + $0x18] sm:$0xff] %v2013
        %2020 = vst [vmem:[%s379 + $0x20] sm:$0xff] %v2014
        %2021 = vst [vmem:[%s379 + $0x28] sm:$0xff] %v2015
        %s2022 = sand.u32 %s269, 1
        %s2023 = scalar_lea.sflag [#allocation4], %s2022
        %s2024 = sand.u32 %s269, 1
        %s2025 = smul.addr %s2024, 48
        %s2026 = scalar_lea.vmem [#allocation3], %s2025
        // Predicated region
        $region65: #{adapter_forward.1} parent=63 // pred_check
          %p2027 = pneg %p279
        $region66: #{adapter_forward.1} parent=63 // pred_check_branch
          %2029 = sbr.rel (%p2027) target = $region68
        $region67: #{adapter_forward.1} parent=63 // pred_region
          %2031 = vsyncadd %s2023, 0
          %s2032 = smul.addr %s25, 6
          %s2033 = smul.addr %s2032, 8
          %s2034 = scalar_lea.hbm %s11, %s2033
          %s2036 = sshll.u32 %s2026, 4
          %s2037 = int_to_ptr.vmem [resolvable:$true] %s2036
          %s2038 = sshll.u32 %s2034, 4
          %s2039 = int_to_ptr.hbm [resolvable:$true] %s2038
          %2041 = dma.vmem_to_hbm [thread:$0]  %s2037, 768, %s2039, %s2023
        $region68: #{adapter_forward.1} parent=63 // pred_fallthru
          _
      $region64: #{adapter_forward.1} parent=5 // pred_fallthru
        _
      %p2042 = scmp.le.s32.totalorder 2, %s20
      // Predicated region
      $region69: #{adapter_forward.1} parent=5 // pred_check
        %p2043 = pneg %p2042
      $region70: #{adapter_forward.1} parent=5 // pred_check_branch
        %2045 = sbr.rel (%p2043) target = $region72
      $region71: #{adapter_forward.1} parent=5 // pred_region
        %s2046 = ssub.s32 %s20, 2
        // Predicated region
        $region73: #{adapter_forward.1} parent=71 // pred_check
          %p2047 = pneg %p285
        $region74: #{adapter_forward.1} parent=71 // pred_check_branch
          %2049 = sbr.rel (%p2047) target = $region76
        $region75: #{adapter_forward.1} parent=71 // pred_region
          %s2050 = sand.u32 %s270, 1
          %s2051 = scalar_lea.sflag [#allocation4], %s2050
          %s2052 = sand.u32 %s270, 1
          %s2053 = smul.addr %s2052, 48
          %s2054 = scalar_lea.vmem [#allocation3], %s2053
          %2056 = dma.done %s2051, 768
        $region76: #{adapter_forward.1} parent=71 // pred_fallthru
          _
      $region72: #{adapter_forward.1} parent=5 // pred_fallthru
        _
    $region6: #{adapter_forward.1} parent=1 // loop_footer
      %s24 = sadd.s32 1, %s20
    $region7: #{adapter_forward.1} parent=1 // loop_footer_branch
      %19 = sbr.rel target = $region3
    $region8: #{adapter_forward.1} parent=1 // loop_exit
      _
    %2057 = vsyncpa [#allocation4], 1
    %s2058 = scalar_lea.sflag [#allocation4], 1
    %2059 = vsyncpa %s2058, 1

</llo_original>
